<compile_context>
chip_gen: v7x
topology: tpu7x:2x2x1
jax: 0.10.0
libtpu: 0.0.40
codegen_flags: <defaults>
</compile_context>

<pallas_src>
import functools

import jax
import jax.numpy as jnp
from jax import lax
from jax.experimental import pallas as pl
from jax.experimental.pallas import tpu as pltpu


def _fuse_kernel(x_ref, w_ref, b_ref, o_ref, *, k_sz, alpha, pad, t_f, t_out):
    """One (batch, HW-chunk) block: strided temporal conv + bias + ReLU.

    x_ref: (1, C_in, T_f, HWc)   fast pathway, full time axis (bf16)
    w_ref: (K, C_out, C_in)      conv weight with BN scale folded in (bf16)
    b_ref: (C_out, 1)            folded BN bias (f32)
    o_ref: (1, C_out, T_out, HWc)
    """
    bias = b_ref[...]                                    # (C_out, 1) f32
    c_out = w_ref.shape[1]
    hw_c = x_ref.shape[3]

    for to in range(t_out):                              # static unroll
        acc = None
        for ki in range(k_sz):                           # static unroll
            t_in = to * alpha + ki - pad                 # compile-time constant
            if t_in < 0 or t_in >= t_f:
                continue                                 # zero-padded tap: skip
            xt = x_ref[0, :, t_in, :]                    # (C_in, HWc), lane-dense
            wk = w_ref[ki]                               # (C_out, C_in)
            d = jnp.dot(wk, xt, preferred_element_type=jnp.float32)
            acc = d if acc is None else acc + d
        if acc is None:                                  # degenerate config guard
            acc = jnp.zeros((c_out, hw_c), jnp.float32)
        y = jnp.maximum(acc + bias, 0.0)                 # f32 epilogue (BN bias + ReLU)
        o_ref[0, :, to, :] = y.astype(o_ref.dtype)       # lane-dense store


def _pick_hw_chunk(hw):
    """Largest lane-axis chunk: full HW when small, else a multiple of 128."""
    if hw <= 2048:
        return hw
    for c in (2048, 1536, 1024, 512, 256, 128):
        if hw % c == 0:
            return c
    return hw


def fuse_conv_bn_relu(xf, w_koc, bias, *, alpha, k_sz, pad, t_out, out_dtype):
    """xf: (N, C_in, T_f, HW)  w_koc: (K, C_out, C_in)  bias: (C_out, 1)."""
    n, c_in, t_f, hw = xf.shape
    _, c_out, _ = w_koc.shape
    hw_c = _pick_hw_chunk(hw)

    kernel = functools.partial(
        _fuse_kernel, k_sz=k_sz, alpha=alpha, pad=pad, t_f=t_f, t_out=t_out)

    return pl.pallas_call(
        kernel,
        out_shape=jax.ShapeDtypeStruct((n, c_out, t_out, hw), out_dtype),
        grid_spec=pltpu.PrefetchScalarGridSpec(
            num_scalar_prefetch=0,
            grid=(n, hw // hw_c),
            in_specs=[
                # full time axis, one HW chunk of the fast pathway
                pl.BlockSpec((1, c_in, t_f, hw_c),
                             lambda ni, hi: (ni, 0, 0, hi)),
                # entire (scale-folded) conv weight, resident in VMEM
                pl.BlockSpec((k_sz, c_out, c_in), lambda ni, hi: (0, 0, 0)),
                # folded BN bias
                pl.BlockSpec((c_out, 1), lambda ni, hi: (0, 0)),
            ],
            out_specs=pl.BlockSpec((1, c_out, t_out, hw_c),
                                   lambda ni, hi: (ni, 0, 0, hi)),
        ),
        compiler_params=pltpu.CompilerParams(
            dimension_semantics=("parallel", "parallel")),
    )(xf, w_koc, bias)


class FuseFastToSlowPallas:
    """Forward-only JAX/Pallas re-implementation of FuseFastToSlow."""

    def __init__(self, dim_in, fusion_conv_channel_ratio, fusion_kernel, alpha,
                 eps=1e-5, compute_dtype=jnp.bfloat16, key=jax.random.PRNGKey(0)):
        self.dim_in = dim_in
        self.c_out = dim_in * fusion_conv_channel_ratio
        self.k = fusion_kernel
        self.alpha = alpha
        self.eps = eps
        self.compute_dtype = compute_dtype

        kw, kg, kb, km, kv = jax.random.split(key, 5)
        # Conv3d weight: (C_out, C_in, K, 1, 1), bias=False
        fan_in = dim_in * fusion_kernel
        bound = 1.0 / (fan_in ** 0.5)
        self.w = jax.random.uniform(
            kw, (self.c_out, dim_in, fusion_kernel, 1, 1),
            jnp.float32, -bound, bound)
        # BatchNorm3d params / running stats (deterministic, non-trivial)
        self.gamma = jax.random.uniform(kg, (self.c_out,), jnp.float32, 0.5, 1.5)
        self.beta = jax.random.uniform(kb, (self.c_out,), jnp.float32, -0.5, 0.5)
        self.running_mean = jax.random.uniform(
            km, (self.c_out,), jnp.float32, -0.1, 0.1)
        self.running_var = jax.random.uniform(
            kv, (self.c_out,), jnp.float32, 0.5, 1.5)
        # TODO(synk): BatchNorm is applied in inference mode (running stats
        # folded into scale/bias); training-mode batch statistics not computed.

    def __call__(self, x):
        x_s, x_f = x                       # NCDHW = (N, C, T, H, W)
        n, c_f, t_f, h, w = x_f.shape
        pad = self.k // 2
        t_out = (t_f + 2 * pad - self.k) // self.alpha + 1
        hw = h * w

        # NCDHW -> (N, C_in, T, H*W): a free reshape, no transpose, no pad.
        xf = x_f.reshape(n, c_f, t_f, hw)

        # Fold BatchNorm (eval mode): scale into the conv weight, bias separate.
        scale = self.gamma / jnp.sqrt(self.running_var + self.eps)
        bias = (self.beta - self.running_mean * scale).reshape(self.c_out, 1)
        # (C_out, C_in, K, 1, 1) -> scale-folded (K, C_out, C_in)
        w_koc = jnp.transpose(self.w[:, :, :, 0, 0] * scale[:, None, None],
                              (2, 0, 1))

        fuse = fuse_conv_bn_relu(
            xf.astype(self.compute_dtype),
            w_koc.astype(self.compute_dtype),
            bias.astype(jnp.float32),
            alpha=self.alpha, k_sz=self.k, pad=pad, t_out=t_out,
            out_dtype=x_f.dtype)

        # (N, C_out, T_out, H*W) is already NCDHW order: free reshape only.
        fuse = fuse.reshape(n, self.c_out, t_out, h, w)
        x_s_fuse = jnp.concatenate([x_s, fuse], axis=1)
        return [x_s_fuse, x_f]


def reference_forward(module, x):
    """Pure-JAX reference (f32 conv3d + eval-BN + relu + concat)."""
    x_s, x_f = x
    fuse = lax.conv_general_dilated(
        x_f, module.w,
        window_strides=(module.alpha, 1, 1),
        padding=[(module.k // 2, module.k // 2), (0, 0), (0, 0)],
        dimension_numbers=("NCDHW", "OIDHW", "NCDHW"))
    scale = module.gamma / jnp.sqrt(module.running_var + module.eps)
    bias = module.beta - module.running_mean * scale
    fuse = fuse * scale[None, :, None, None, None] \
        + bias[None, :, None, None, None]
    fuse = jnp.maximum(fuse, 0.0)
    return [jnp.concatenate([x_s, fuse], axis=1), x_f]


if __name__ == "__main__":
    key = jax.random.PRNGKey(0)
    k_s, k_f, k_p = jax.random.split(key, 3)

    dim_in, ratio, fusion_kernel, alpha = 4, 2, 5, 4
    n, h, w = 2, 8, 8
    t_fast = 16
    t_slow = t_fast // alpha
    c_slow = 16

    x_s = jax.random.normal(k_s, (n, c_slow, t_slow, h, w), jnp.float32)
    x_f = jax.random.normal(k_f, (n, dim_in, t_fast, h, w), jnp.float32)

    module = FuseFastToSlowPallas(dim_in, ratio, fusion_kernel, alpha, key=k_p)

    out = module([x_s, x_f])
    jax.block_until_ready(out)

    ref = reference_forward(module, [x_s, x_f])
    assert out[0].shape == (n, c_slow + dim_in * ratio, t_slow, h, w)
    # bf16 MXU inputs with f32 accumulation -> loose-but-safe tolerance.
    assert jnp.allclose(out[0], ref[0], atol=5e-2, rtol=5e-2), "mismatch vs ref"
    assert jnp.array_equal(out[1], x_f)

    print("KERNEL_OK")
</pallas_src>

<mosaic_0001>
module attributes {stable_mosaic.version = 11 : i64} {
  func.func @_fuse_kernel(%arg0: i32, %arg1: i32, %arg2: memref<1x4x16x64xbf16, #tpu.memory_space<vmem>>, %arg3: memref<5x8x4xbf16, #tpu.memory_space<vmem>>, %arg4: memref<8x1xf32, #tpu.memory_space<vmem>>, %arg5: memref<1x8x4x64xf32, #tpu.memory_space<vmem>>) attributes {dimension_semantics = [#tpu.dimension_semantics<parallel>, #tpu.dimension_semantics<parallel>], iteration_bounds = array<i64: 2, 1>, scalar_prefetch = 0 : i64, scratch_operands = 0 : i64, tpu.core_type = #tpu.core_type<tc>, window_params = [{transform_indices = @transform_0, window_bounds = array<i64: 1, 4, 16, 64>}, {pipeline_mode = #tpu.pipeline_mode<synchronous>, transform_indices = @transform_1, window_bounds = array<i64: 5, 8, 4>}, {pipeline_mode = #tpu.pipeline_mode<synchronous>, transform_indices = @transform_2, window_bounds = array<i64: 8, 1>}, {transform_indices = @transform_3, window_bounds = array<i64: 1, 8, 4, 64>}]} {
    %c0 = arith.constant 0 : index
    %c0_0 = arith.constant 0 : index
    %0 = vector.load %arg4[%c0, %c0_0] : memref<8x1xf32, #tpu.memory_space<vmem>>, vector<8x1xf32>
    %c0_1 = arith.constant 0 : index
    %c0_2 = arith.constant 0 : index
    %c0_3 = arith.constant 0 : index
    %c0_4 = arith.constant 0 : index
    %1 = vector.load %arg2[%c0_1, %c0_2, %c0_3, %c0_4] : memref<1x4x16x64xbf16, #tpu.memory_space<vmem>>, vector<1x4x1x64xbf16>
    %2 = vector.shape_cast %1 : vector<1x4x1x64xbf16> to vector<4x64xbf16>
    %c2 = arith.constant 2 : index
    %c0_5 = arith.constant 0 : index
    %c0_6 = arith.constant 0 : index
    %3 = vector.load %arg3[%c2, %c0_5, %c0_6] : memref<5x8x4xbf16, #tpu.memory_space<vmem>>, vector<1x8x4xbf16>
    %4 = vector.shape_cast %3 : vector<1x8x4xbf16> to vector<8x4xbf16>
    %cst = arith.constant dense<0.000000e+00> : vector<8x64xf32>
    %5 = tpu.matmul %4, %2, %cst {dimension_numbers = #tpu.dot_dimension_numbers<[1], [0], [0], [1], [0, 0, 1, 1], [], []>} : vector<8x4xbf16>, vector<4x64xbf16>, vector<8x64xf32> -> vector<8x64xf32>
    %c0_7 = arith.constant 0 : index
    %c0_8 = arith.constant 0 : index
    %c1 = arith.constant 1 : index
    %c0_9 = arith.constant 0 : index
    %6 = vector.load %arg2[%c0_7, %c0_8, %c1, %c0_9] : memref<1x4x16x64xbf16, #tpu.memory_space<vmem>>, vector<1x4x1x64xbf16>
    %7 = vector.shape_cast %6 : vector<1x4x1x64xbf16> to vector<4x64xbf16>
    %c3 = arith.constant 3 : index
    %c0_10 = arith.constant 0 : index
    %c0_11 = arith.constant 0 : index
    %8 = vector.load %arg3[%c3, %c0_10, %c0_11] : memref<5x8x4xbf16, #tpu.memory_space<vmem>>, vector<1x8x4xbf16>
    %9 = vector.shape_cast %8 : vector<1x8x4xbf16> to vector<8x4xbf16>
    %cst_12 = arith.constant dense<0.000000e+00> : vector<8x64xf32>
    %10 = tpu.matmul %9, %7, %cst_12 {dimension_numbers = #tpu.dot_dimension_numbers<[1], [0], [0], [1], [0, 0, 1, 1], [], []>} : vector<8x4xbf16>, vector<4x64xbf16>, vector<8x64xf32> -> vector<8x64xf32>
    %11 = arith.addf %5, %10 : vector<8x64xf32>
    %c0_13 = arith.constant 0 : index
    %c0_14 = arith.constant 0 : index
    %c2_15 = arith.constant 2 : index
    %c0_16 = arith.constant 0 : index
    %12 = vector.load %arg2[%c0_13, %c0_14, %c2_15, %c0_16] : memref<1x4x16x64xbf16, #tpu.memory_space<vmem>>, vector<1x4x1x64xbf16>
    %13 = vector.shape_cast %12 : vector<1x4x1x64xbf16> to vector<4x64xbf16>
    %c4 = arith.constant 4 : index
    %c0_17 = arith.constant 0 : index
    %c0_18 = arith.constant 0 : index
    %14 = vector.load %arg3[%c4, %c0_17, %c0_18] : memref<5x8x4xbf16, #tpu.memory_space<vmem>>, vector<1x8x4xbf16>
    %15 = vector.shape_cast %14 : vector<1x8x4xbf16> to vector<8x4xbf16>
    %cst_19 = arith.constant dense<0.000000e+00> : vector<8x64xf32>
    %16 = tpu.matmul %15, %13, %cst_19 {dimension_numbers = #tpu.dot_dimension_numbers<[1], [0], [0], [1], [0, 0, 1, 1], [], []>} : vector<8x4xbf16>, vector<4x64xbf16>, vector<8x64xf32> -> vector<8x64xf32>
    %17 = arith.addf %11, %16 : vector<8x64xf32>
    %18 = vector.broadcast %0 : vector<8x1xf32> to vector<8x64xf32>
    %19 = arith.addf %17, %18 : vector<8x64xf32>
    %cst_20 = arith.constant 0.000000e+00 : f32
    %20 = vector.broadcast %cst_20 : f32 to vector<8x64xf32>
    %21 = arith.maximumf %19, %20 : vector<8x64xf32>
    %c0_21 = arith.constant 0 : index
    %c0_22 = arith.constant 0 : index
    %c0_23 = arith.constant 0 : index
    %c0_24 = arith.constant 0 : index
    %22 = vector.load %arg5[%c0_21, %c0_22, %c0_23, %c0_24] : memref<1x8x4x64xf32, #tpu.memory_space<vmem>>, vector<1x8x1x64xf32>
    %23 = vector.shape_cast %22 : vector<1x8x1x64xf32> to vector<8x64xf32>
    %24 = vector.shape_cast %21 : vector<8x64xf32> to vector<1x8x1x64xf32>
    tpu.vector_store %arg5[%c0_21, %c0_22, %c0_23, %c0_24], %24 {strides = array<i32>} : memref<1x8x4x64xf32, #tpu.memory_space<vmem>>, vector<1x8x1x64xf32>,
    %c0_25 = arith.constant 0 : index
    %c0_26 = arith.constant 0 : index
    %c2_27 = arith.constant 2 : index
    %c0_28 = arith.constant 0 : index
    %25 = vector.load %arg2[%c0_25, %c0_26, %c2_27, %c0_28] : memref<1x4x16x64xbf16, #tpu.memory_space<vmem>>, vector<1x4x1x64xbf16>
    %26 = vector.shape_cast %25 : vector<1x4x1x64xbf16> to vector<4x64xbf16>
    %c0_29 = arith.constant 0 : index
    %c0_30 = arith.constant 0 : index
    %c0_31 = arith.constant 0 : index
    %27 = vector.load %arg3[%c0_29, %c0_30, %c0_31] : memref<5x8x4xbf16, #tpu.memory_space<vmem>>, vector<1x8x4xbf16>
    %28 = vector.shape_cast %27 : vector<1x8x4xbf16> to vector<8x4xbf16>
    %cst_32 = arith.constant dense<0.000000e+00> : vector<8x64xf32>
    %29 = tpu.matmul %28, %26, %cst_32 {dimension_numbers = #tpu.dot_dimension_numbers<[1], [0], [0], [1], [0, 0, 1, 1], [], []>} : vector<8x4xbf16>, vector<4x64xbf16>, vector<8x64xf32> -> vector<8x64xf32>
    %c0_33 = arith.constant 0 : index
    %c0_34 = arith.constant 0 : index
    %c3_35 = arith.constant 3 : index
    %c0_36 = arith.constant 0 : index
    %30 = vector.load %arg2[%c0_33, %c0_34, %c3_35, %c0_36] : memref<1x4x16x64xbf16, #tpu.memory_space<vmem>>, vector<1x4x1x64xbf16>
    %31 = vector.shape_cast %30 : vector<1x4x1x64xbf16> to vector<4x64xbf16>
    %c1_37 = arith.constant 1 : index
    %c0_38 = arith.constant 0 : index
    %c0_39 = arith.constant 0 : index
    %32 = vector.load %arg3[%c1_37, %c0_38, %c0_39] : memref<5x8x4xbf16, #tpu.memory_space<vmem>>, vector<1x8x4xbf16>
    %33 = vector.shape_cast %32 : vector<1x8x4xbf16> to vector<8x4xbf16>
    %cst_40 = arith.constant dense<0.000000e+00> : vector<8x64xf32>
    %34 = tpu.matmul %33, %31, %cst_40 {dimension_numbers = #tpu.dot_dimension_numbers<[1], [0], [0], [1], [0, 0, 1, 1], [], []>} : vector<8x4xbf16>, vector<4x64xbf16>, vector<8x64xf32> -> vector<8x64xf32>
    %35 = arith.addf %29, %34 : vector<8x64xf32>
    %c0_41 = arith.constant 0 : index
    %c0_42 = arith.constant 0 : index
    %c4_43 = arith.constant 4 : index
    %c0_44 = arith.constant 0 : index
    %36 = vector.load %arg2[%c0_41, %c0_42, %c4_43, %c0_44] : memref<1x4x16x64xbf16, #tpu.memory_space<vmem>>, vector<1x4x1x64xbf16>
    %37 = vector.shape_cast %36 : vector<1x4x1x64xbf16> to vector<4x64xbf16>
    %c2_45 = arith.constant 2 : index
    %c0_46 = arith.constant 0 : index
    %c0_47 = arith.constant 0 : index
    %38 = vector.load %arg3[%c2_45, %c0_46, %c0_47] : memref<5x8x4xbf16, #tpu.memory_space<vmem>>, vector<1x8x4xbf16>
    %39 = vector.shape_cast %38 : vector<1x8x4xbf16> to vector<8x4xbf16>
    %cst_48 = arith.constant dense<0.000000e+00> : vector<8x64xf32>
    %40 = tpu.matmul %39, %37, %cst_48 {dimension_numbers = #tpu.dot_dimension_numbers<[1], [0], [0], [1], [0, 0, 1, 1], [], []>} : vector<8x4xbf16>, vector<4x64xbf16>, vector<8x64xf32> -> vector<8x64xf32>
    %41 = arith.addf %35, %40 : vector<8x64xf32>
    %c0_49 = arith.constant 0 : index
    %c0_50 = arith.constant 0 : index
    %c5 = arith.constant 5 : index
    %c0_51 = arith.constant 0 : index
    %42 = vector.load %arg2[%c0_49, %c0_50, %c5, %c0_51] : memref<1x4x16x64xbf16, #tpu.memory_space<vmem>>, vector<1x4x1x64xbf16>
    %43 = vector.shape_cast %42 : vector<1x4x1x64xbf16> to vector<4x64xbf16>
    %c3_52 = arith.constant 3 : index
    %c0_53 = arith.constant 0 : index
    %c0_54 = arith.constant 0 : index
    %44 = vector.load %arg3[%c3_52, %c0_53, %c0_54] : memref<5x8x4xbf16, #tpu.memory_space<vmem>>, vector<1x8x4xbf16>
    %45 = vector.shape_cast %44 : vector<1x8x4xbf16> to vector<8x4xbf16>
    %cst_55 = arith.constant dense<0.000000e+00> : vector<8x64xf32>
    %46 = tpu.matmul %45, %43, %cst_55 {dimension_numbers = #tpu.dot_dimension_numbers<[1], [0], [0], [1], [0, 0, 1, 1], [], []>} : vector<8x4xbf16>, vector<4x64xbf16>, vector<8x64xf32> -> vector<8x64xf32>
    %47 = arith.addf %41, %46 : vector<8x64xf32>
    %c0_56 = arith.constant 0 : index
    %c0_57 = arith.constant 0 : index
    %c6 = arith.constant 6 : index
    %c0_58 = arith.constant 0 : index
    %48 = vector.load %arg2[%c0_56, %c0_57, %c6, %c0_58] : memref<1x4x16x64xbf16, #tpu.memory_space<vmem>>, vector<1x4x1x64xbf16>
    %49 = vector.shape_cast %48 : vector<1x4x1x64xbf16> to vector<4x64xbf16>
    %c4_59 = arith.constant 4 : index
    %c0_60 = arith.constant 0 : index
    %c0_61 = arith.constant 0 : index
    %50 = vector.load %arg3[%c4_59, %c0_60, %c0_61] : memref<5x8x4xbf16, #tpu.memory_space<vmem>>, vector<1x8x4xbf16>
    %51 = vector.shape_cast %50 : vector<1x8x4xbf16> to vector<8x4xbf16>
    %cst_62 = arith.constant dense<0.000000e+00> : vector<8x64xf32>
    %52 = tpu.matmul %51, %49, %cst_62 {dimension_numbers = #tpu.dot_dimension_numbers<[1], [0], [0], [1], [0, 0, 1, 1], [], []>} : vector<8x4xbf16>, vector<4x64xbf16>, vector<8x64xf32> -> vector<8x64xf32>
    %53 = arith.addf %47, %52 : vector<8x64xf32>
    %54 = vector.broadcast %0 : vector<8x1xf32> to vector<8x64xf32>
    %55 = arith.addf %53, %54 : vector<8x64xf32>
    %cst_63 = arith.constant 0.000000e+00 : f32
    %56 = vector.broadcast %cst_63 : f32 to vector<8x64xf32>
    %57 = arith.maximumf %55, %56 : vector<8x64xf32>
    %c0_64 = arith.constant 0 : index
    %c0_65 = arith.constant 0 : index
    %c1_66 = arith.constant 1 : index
    %c0_67 = arith.constant 0 : index
    %58 = vector.load %arg5[%c0_64, %c0_65, %c1_66, %c0_67] : memref<1x8x4x64xf32, #tpu.memory_space<vmem>>, vector<1x8x1x64xf32>
    %59 = vector.shape_cast %58 : vector<1x8x1x64xf32> to vector<8x64xf32>
    %60 = vector.shape_cast %57 : vector<8x64xf32> to vector<1x8x1x64xf32>
    tpu.vector_store %arg5[%c0_64, %c0_65, %c1_66, %c0_67], %60 {strides = array<i32>} : memref<1x8x4x64xf32, #tpu.memory_space<vmem>>, vector<1x8x1x64xf32>,
    %c0_68 = arith.constant 0 : index
    %c0_69 = arith.constant 0 : index
    %c6_70 = arith.constant 6 : index
    %c0_71 = arith.constant 0 : index
    %61 = vector.load %arg2[%c0_68, %c0_69, %c6_70, %c0_71] : memref<1x4x16x64xbf16, #tpu.memory_space<vmem>>, vector<1x4x1x64xbf16>
    %62 = vector.shape_cast %61 : vector<1x4x1x64xbf16> to vector<4x64xbf16>
    %c0_72 = arith.constant 0 : index
    %c0_73 = arith.constant 0 : index
    %c0_74 = arith.constant 0 : index
    %63 = vector.load %arg3[%c0_72, %c0_73, %c0_74] : memref<5x8x4xbf16, #tpu.memory_space<vmem>>, vector<1x8x4xbf16>
    %64 = vector.shape_cast %63 : vector<1x8x4xbf16> to vector<8x4xbf16>
    %cst_75 = arith.constant dense<0.000000e+00> : vector<8x64xf32>
    %65 = tpu.matmul %64, %62, %cst_75 {dimension_numbers = #tpu.dot_dimension_numbers<[1], [0], [0], [1], [0, 0, 1, 1], [], []>} : vector<8x4xbf16>, vector<4x64xbf16>, vector<8x64xf32> -> vector<8x64xf32>
    %c0_76 = arith.constant 0 : index
    %c0_77 = arith.constant 0 : index
    %c7 = arith.constant 7 : index
    %c0_78 = arith.constant 0 : index
    %66 = vector.load %arg2[%c0_76, %c0_77, %c7, %c0_78] : memref<1x4x16x64xbf16, #tpu.memory_space<vmem>>, vector<1x4x1x64xbf16>
    %67 = vector.shape_cast %66 : vector<1x4x1x64xbf16> to vector<4x64xbf16>
    %c1_79 = arith.constant 1 : index
    %c0_80 = arith.constant 0 : index
    %c0_81 = arith.constant 0 : index
    %68 = vector.load %arg3[%c1_79, %c0_80, %c0_81] : memref<5x8x4xbf16, #tpu.memory_space<vmem>>, vector<1x8x4xbf16>
    %69 = vector.shape_cast %68 : vector<1x8x4xbf16> to vector<8x4xbf16>
    %cst_82 = arith.constant dense<0.000000e+00> : vector<8x64xf32>
    %70 = tpu.matmul %69, %67, %cst_82 {dimension_numbers = #tpu.dot_dimension_numbers<[1], [0], [0], [1], [0, 0, 1, 1], [], []>} : vector<8x4xbf16>, vector<4x64xbf16>, vector<8x64xf32> -> vector<8x64xf32>
    %71 = arith.addf %65, %70 : vector<8x64xf32>
    %c0_83 = arith.constant 0 : index
    %c0_84 = arith.constant 0 : index
    %c8 = arith.constant 8 : index
    %c0_85 = arith.constant 0 : index
    %72 = vector.load %arg2[%c0_83, %c0_84, %c8, %c0_85] : memref<1x4x16x64xbf16, #tpu.memory_space<vmem>>, vector<1x4x1x64xbf16>
    %73 = vector.shape_cast %72 : vector<1x4x1x64xbf16> to vector<4x64xbf16>
    %c2_86 = arith.constant 2 : index
    %c0_87 = arith.constant 0 : index
    %c0_88 = arith.constant 0 : index
    %74 = vector.load %arg3[%c2_86, %c0_87, %c0_88] : memref<5x8x4xbf16, #tpu.memory_space<vmem>>, vector<1x8x4xbf16>
    %75 = vector.shape_cast %74 : vector<1x8x4xbf16> to vector<8x4xbf16>
    %cst_89 = arith.constant dense<0.000000e+00> : vector<8x64xf32>
    %76 = tpu.matmul %75, %73, %cst_89 {dimension_numbers = #tpu.dot_dimension_numbers<[1], [0], [0], [1], [0, 0, 1, 1], [], []>} : vector<8x4xbf16>, vector<4x64xbf16>, vector<8x64xf32> -> vector<8x64xf32>
    %77 = arith.addf %71, %76 : vector<8x64xf32>
    %c0_90 = arith.constant 0 : index
    %c0_91 = arith.constant 0 : index
    %c9 = arith.constant 9 : index
    %c0_92 = arith.constant 0 : index
    %78 = vector.load %arg2[%c0_90, %c0_91, %c9, %c0_92] : memref<1x4x16x64xbf16, #tpu.memory_space<vmem>>, vector<1x4x1x64xbf16>
    %79 = vector.shape_cast %78 : vector<1x4x1x64xbf16> to vector<4x64xbf16>
    %c3_93 = arith.constant 3 : index
    %c0_94 = arith.constant 0 : index
    %c0_95 = arith.constant 0 : index
    %80 = vector.load %arg3[%c3_93, %c0_94, %c0_95] : memref<5x8x4xbf16, #tpu.memory_space<vmem>>, vector<1x8x4xbf16>
    %81 = vector.shape_cast %80 : vector<1x8x4xbf16> to vector<8x4xbf16>
    %cst_96 = arith.constant dense<0.000000e+00> : vector<8x64xf32>
    %82 = tpu.matmul %81, %79, %cst_96 {dimension_numbers = #tpu.dot_dimension_numbers<[1], [0], [0], [1], [0, 0, 1, 1], [], []>} : vector<8x4xbf16>, vector<4x64xbf16>, vector<8x64xf32> -> vector<8x64xf32>
    %83 = arith.addf %77, %82 : vector<8x64xf32>
    %c0_97 = arith.constant 0 : index
    %c0_98 = arith.constant 0 : index
    %c10 = arith.constant 10 : index
    %c0_99 = arith.constant 0 : index
    %84 = vector.load %arg2[%c0_97, %c0_98, %c10, %c0_99] : memref<1x4x16x64xbf16, #tpu.memory_space<vmem>>, vector<1x4x1x64xbf16>
    %85 = vector.shape_cast %84 : vector<1x4x1x64xbf16> to vector<4x64xbf16>
    %c4_100 = arith.constant 4 : index
    %c0_101 = arith.constant 0 : index
    %c0_102 = arith.constant 0 : index
    %86 = vector.load %arg3[%c4_100, %c0_101, %c0_102] : memref<5x8x4xbf16, #tpu.memory_space<vmem>>, vector<1x8x4xbf16>
    %87 = vector.shape_cast %86 : vector<1x8x4xbf16> to vector<8x4xbf16>
    %cst_103 = arith.constant dense<0.000000e+00> : vector<8x64xf32>
    %88 = tpu.matmul %87, %85, %cst_103 {dimension_numbers = #tpu.dot_dimension_numbers<[1], [0], [0], [1], [0, 0, 1, 1], [], []>} : vector<8x4xbf16>, vector<4x64xbf16>, vector<8x64xf32> -> vector<8x64xf32>
    %89 = arith.addf %83, %88 : vector<8x64xf32>
    %90 = vector.broadcast %0 : vector<8x1xf32> to vector<8x64xf32>
    %91 = arith.addf %89, %90 : vector<8x64xf32>
    %cst_104 = arith.constant 0.000000e+00 : f32
    %92 = vector.broadcast %cst_104 : f32 to vector<8x64xf32>
    %93 = arith.maximumf %91, %92 : vector<8x64xf32>
    %c0_105 = arith.constant 0 : index
    %c0_106 = arith.constant 0 : index
    %c2_107 = arith.constant 2 : index
    %c0_108 = arith.constant 0 : index
    %94 = vector.load %arg5[%c0_105, %c0_106, %c2_107, %c0_108] : memref<1x8x4x64xf32, #tpu.memory_space<vmem>>, vector<1x8x1x64xf32>
    %95 = vector.shape_cast %94 : vector<1x8x1x64xf32> to vector<8x64xf32>
    %96 = vector.shape_cast %93 : vector<8x64xf32> to vector<1x8x1x64xf32>
    tpu.vector_store %arg5[%c0_105, %c0_106, %c2_107, %c0_108], %96 {strides = array<i32>} : memref<1x8x4x64xf32, #tpu.memory_space<vmem>>, vector<1x8x1x64xf32>,
    %c0_109 = arith.constant 0 : index
    %c0_110 = arith.constant 0 : index
    %c10_111 = arith.constant 10 : index
    %c0_112 = arith.constant 0 : index
    %97 = vector.load %arg2[%c0_109, %c0_110, %c10_111, %c0_112] : memref<1x4x16x64xbf16, #tpu.memory_space<vmem>>, vector<1x4x1x64xbf16>
    %98 = vector.shape_cast %97 : vector<1x4x1x64xbf16> to vector<4x64xbf16>
    %c0_113 = arith.constant 0 : index
    %c0_114 = arith.constant 0 : index
    %c0_115 = arith.constant 0 : index
    %99 = vector.load %arg3[%c0_113, %c0_114, %c0_115] : memref<5x8x4xbf16, #tpu.memory_space<vmem>>, vector<1x8x4xbf16>
    %100 = vector.shape_cast %99 : vector<1x8x4xbf16> to vector<8x4xbf16>
    %cst_116 = arith.constant dense<0.000000e+00> : vector<8x64xf32>
    %101 = tpu.matmul %100, %98, %cst_116 {dimension_numbers = #tpu.dot_dimension_numbers<[1], [0], [0], [1], [0, 0, 1, 1], [], []>} : vector<8x4xbf16>, vector<4x64xbf16>, vector<8x64xf32> -> vector<8x64xf32>
    %c0_117 = arith.constant 0 : index
    %c0_118 = arith.constant 0 : index
    %c11 = arith.constant 11 : index
    %c0_119 = arith.constant 0 : index
    %102 = vector.load %arg2[%c0_117, %c0_118, %c11, %c0_119] : memref<1x4x16x64xbf16, #tpu.memory_space<vmem>>, vector<1x4x1x64xbf16>
    %103 = vector.shape_cast %102 : vector<1x4x1x64xbf16> to vector<4x64xbf16>
    %c1_120 = arith.constant 1 : index
    %c0_121 = arith.constant 0 : index
    %c0_122 = arith.constant 0 : index
    %104 = vector.load %arg3[%c1_120, %c0_121, %c0_122] : memref<5x8x4xbf16, #tpu.memory_space<vmem>>, vector<1x8x4xbf16>
    %105 = vector.shape_cast %104 : vector<1x8x4xbf16> to vector<8x4xbf16>
    %cst_123 = arith.constant dense<0.000000e+00> : vector<8x64xf32>
    %106 = tpu.matmul %105, %103, %cst_123 {dimension_numbers = #tpu.dot_dimension_numbers<[1], [0], [0], [1], [0, 0, 1, 1], [], []>} : vector<8x4xbf16>, vector<4x64xbf16>, vector<8x64xf32> -> vector<8x64xf32>
    %107 = arith.addf %101, %106 : vector<8x64xf32>
    %c0_124 = arith.constant 0 : index
    %c0_125 = arith.constant 0 : index
    %c12 = arith.constant 12 : index
    %c0_126 = arith.constant 0 : index
    %108 = vector.load %arg2[%c0_124, %c0_125, %c12, %c0_126] : memref<1x4x16x64xbf16, #tpu.memory_space<vmem>>, vector<1x4x1x64xbf16>
    %109 = vector.shape_cast %108 : vector<1x4x1x64xbf16> to vector<4x64xbf16>
    %c2_127 = arith.constant 2 : index
    %c0_128 = arith.constant 0 : index
    %c0_129 = arith.constant 0 : index
    %110 = vector.load %arg3[%c2_127, %c0_128, %c0_129] : memref<5x8x4xbf16, #tpu.memory_space<vmem>>, vector<1x8x4xbf16>
    %111 = vector.shape_cast %110 : vector<1x8x4xbf16> to vector<8x4xbf16>
    %cst_130 = arith.constant dense<0.000000e+00> : vector<8x64xf32>
    %112 = tpu.matmul %111, %109, %cst_130 {dimension_numbers = #tpu.dot_dimension_numbers<[1], [0], [0], [1], [0, 0, 1, 1], [], []>} : vector<8x4xbf16>, vector<4x64xbf16>, vector<8x64xf32> -> vector<8x64xf32>
    %113 = arith.addf %107, %112 : vector<8x64xf32>
    %c0_131 = arith.constant 0 : index
    %c0_132 = arith.constant 0 : index
    %c13 = arith.constant 13 : index
    %c0_133 = arith.constant 0 : index
    %114 = vector.load %arg2[%c0_131, %c0_132, %c13, %c0_133] : memref<1x4x16x64xbf16, #tpu.memory_space<vmem>>, vector<1x4x1x64xbf16>
    %115 = vector.shape_cast %114 : vector<1x4x1x64xbf16> to vector<4x64xbf16>
    %c3_134 = arith.constant 3 : index
    %c0_135 = arith.constant 0 : index
    %c0_136 = arith.constant 0 : index
    %116 = vector.load %arg3[%c3_134, %c0_135, %c0_136] : memref<5x8x4xbf16, #tpu.memory_space<vmem>>, vector<1x8x4xbf16>
    %117 = vector.shape_cast %116 : vector<1x8x4xbf16> to vector<8x4xbf16>
    %cst_137 = arith.constant dense<0.000000e+00> : vector<8x64xf32>
    %118 = tpu.matmul %117, %115, %cst_137 {dimension_numbers = #tpu.dot_dimension_numbers<[1], [0], [0], [1], [0, 0, 1, 1], [], []>} : vector<8x4xbf16>, vector<4x64xbf16>, vector<8x64xf32> -> vector<8x64xf32>
    %119 = arith.addf %113, %118 : vector<8x64xf32>
    %c0_138 = arith.constant 0 : index
    %c0_139 = arith.constant 0 : index
    %c14 = arith.constant 14 : index
    %c0_140 = arith.constant 0 : index
    %120 = vector.load %arg2[%c0_138, %c0_139, %c14, %c0_140] : memref<1x4x16x64xbf16, #tpu.memory_space<vmem>>, vector<1x4x1x64xbf16>
    %121 = vector.shape_cast %120 : vector<1x4x1x64xbf16> to vector<4x64xbf16>
    %c4_141 = arith.constant 4 : index
    %c0_142 = arith.constant 0 : index
    %c0_143 = arith.constant 0 : index
    %122 = vector.load %arg3[%c4_141, %c0_142, %c0_143] : memref<5x8x4xbf16, #tpu.memory_space<vmem>>, vector<1x8x4xbf16>
    %123 = vector.shape_cast %122 : vector<1x8x4xbf16> to vector<8x4xbf16>
    %cst_144 = arith.constant dense<0.000000e+00> : vector<8x64xf32>
    %124 = tpu.matmul %123, %121, %cst_144 {dimension_numbers = #tpu.dot_dimension_numbers<[1], [0], [0], [1], [0, 0, 1, 1], [], []>} : vector<8x4xbf16>, vector<4x64xbf16>, vector<8x64xf32> -> vector<8x64xf32>
    %125 = arith.addf %119, %124 : vector<8x64xf32>
    %126 = vector.broadcast %0 : vector<8x1xf32> to vector<8x64xf32>
    %127 = arith.addf %125, %126 : vector<8x64xf32>
    %cst_145 = arith.constant 0.000000e+00 : f32
    %128 = vector.broadcast %cst_145 : f32 to vector<8x64xf32>
    %129 = arith.maximumf %127, %128 : vector<8x64xf32>
    %c0_146 = arith.constant 0 : index
    %c0_147 = arith.constant 0 : index
    %c3_148 = arith.constant 3 : index
    %c0_149 = arith.constant 0 : index
    %130 = vector.load %arg5[%c0_146, %c0_147, %c3_148, %c0_149] : memref<1x8x4x64xf32, #tpu.memory_space<vmem>>, vector<1x8x1x64xf32>
    %131 = vector.shape_cast %130 : vector<1x8x1x64xf32> to vector<8x64xf32>
    %132 = vector.shape_cast %129 : vector<8x64xf32> to vector<1x8x1x64xf32>
    tpu.vector_store %arg5[%c0_146, %c0_147, %c3_148, %c0_149], %132 {strides = array<i32>} : memref<1x8x4x64xf32, #tpu.memory_space<vmem>>, vector<1x8x1x64xf32>,
    return
  }
  func.func @transform_0(%arg0: i32, %arg1: i32) -> (i32, i32, i32, i32) {
    %c0_i32 = arith.constant 0 : i32
    %c0_i32_0 = arith.constant 0 : i32
    %c0_i32_1 = arith.constant 0 : i32
    return %arg0, %c0_i32, %c0_i32_0, %arg1 : i32, i32, i32, i32
  }
  func.func @transform_1(%arg0: i32, %arg1: i32) -> (i32, i32, i32) {
    %c0_i32 = arith.constant 0 : i32
    %c0_i32_0 = arith.constant 0 : i32
    %c0_i32_1 = arith.constant 0 : i32
    %c0_i32_2 = arith.constant 0 : i32
    return %c0_i32, %c0_i32_0, %c0_i32_1 : i32, i32, i32
  }
  func.func @transform_2(%arg0: i32, %arg1: i32) -> (i32, i32) {
    %c0_i32 = arith.constant 0 : i32
    %c0_i32_0 = arith.constant 0 : i32
    %c0_i32_1 = arith.constant 0 : i32
    return %c0_i32, %c0_i32_0 : i32, i32
  }
  func.func @transform_3(%arg0: i32, %arg1: i32) -> (i32, i32, i32, i32) {
    %c0_i32 = arith.constant 0 : i32
    %c0_i32_0 = arith.constant 0 : i32
    %c0_i32_1 = arith.constant 0 : i32
    return %arg0, %c0_i32, %c0_i32_0, %arg1 : i32, i32, i32, i32
  }
}

</mosaic_0001>

<llo_original>
// kernel: tpu_custom_call.1
$region0: #{tpu_custom_call.1}
  #allocation0 [shape = 'u32[]', space=smem, size = 0x4, offset = 0x4, fixed_abs, tag = 'smem constant byte address 0x4 - core index']
  #allocation1 [shape = 'u32[144,128]{1,0:T(1,128)}', space=vmem, size = 0x12000, scoped, tag = 'internal scratch']
  %s0 = inlined_call_operand.hbm [shape: bf16[2,4,16,64], index: 0, kind: input, shape index: {}]
  %s1 = inlined_call_operand.vmem [shape: bf16[5,8,4], index: 1, kind: input, shape index: {}]
  %s2 = inlined_call_operand.vmem [shape: f32[8,1], index: 2, kind: input, shape index: {}]
  %s3 = inlined_call_operand.hbm [shape: f32[2,8,4,64], index: 3, kind: output, shape index: {}]
  %s4 = sld [smem:[#allocation0]]
  $region49: #{tpu_custom_call.1} parent=0
    _
  %s6 = ssub.s32 1, %s4
  %s7 = scalar_select 0, %s6, %s4
  $region1: #{tpu_custom_call.1} parent=0
    #allocation2 [shape = 'u8[32768]{0}', space=vmem, size = 0x8000, scoped, tag = 'input window, operand 0']
    #allocation3 [shape = 's32[2]{0}', space=sflag, size = 0x8, scoped, tag = 'scoped memory for tpu_custom_call.1']
    #allocation4 [shape = 's32[2]{0}', space=sflag, size = 0x8, scoped, tag = 'scoped memory for tpu_custom_call.1']
    #allocation5 [shape = 'u8[32768]{0}', space=vmem, size = 0x8000, scoped, tag = 'output window, operand 0']
    %8 = vsyncpa [#allocation3], 0
    %s9 = scalar_lea.sflag [#allocation3], 1
    %10 = vsyncpa %s9, 0
    %11 = vsyncpa [#allocation4], 0
    %s12 = scalar_lea.sflag [#allocation4], 1
    %13 = vsyncpa %s12, 0
    loop: start=0, step=1, limit=4
    $region2: #{tpu_custom_call.1} parent=1 // loop_pre_header
      _
    $region3: #{tpu_custom_call.1} parent=1 // loop_header
      %s15 = sphi 0, %s19
      %p16 = scmp.ge.s32.totalorder %s15, 4
      %s22 = sphi 0, %s34
      %s23 = sphi 0, %s30
      %s24 = sphi 0, %s22
      %s25 = sphi 0, %s23
      %s26 = sphi 0, %s24
      %s27 = sphi 0, %s25
      %s39 = sphi 0, %s41
      %s42 = sphi 0, %s39
      %s43 = sphi 0, %s42
      %s59 = sphi 0, %s43
      %s63 = sphi 0, %s63
      %s65 = sphi 0, %s63
      %s66 = sphi 0, %s65
      %s80 = sphi 0, %s66
      %s84 = sphi 0, %s84
      %s86 = sphi 0, %s84
      %s87 = sphi 0, %s86
      %s101 = sphi 0, %s87
      %s109 = sphi 0, %s111
      %s112 = sphi 0, %s109
      %s113 = sphi 0, %s112
      %s129 = sphi 0, %s113
    $region4: #{tpu_custom_call.1} parent=1 // loop_header_branch
      %18 = sbr.rel (%p16) target = $region8
    $region5: #{tpu_custom_call.1} parent=1 // loop_body
      %s20 = ssub.s32 %s15, 1
      %s21 = ssub.s32 %s15, 2
      %s28 = sadd.s32 1, %s23
      %p29 = scmp.ge.s32.totalorder %s28, 1
      %s30 = scalar_select %p29, 0, %s28
      %s31 = sadd.s32 1, %s22
      %s32 = scalar_select %p29, %s31, %s22
      %p33 = scmp.ge.s32.totalorder %s32, 2
      %s34 = scalar_select %p33, 0, %s32
      %s35 = ssub.s32 %s22, %s34
      %s36 = ssub.s32 %s23, %s30
      %s37 = sor.u32 %s35, %s36
      %p38 = scmp.eq.s32.totalorder %s37, 0
      %s40 = sadd.s32 %s39, 1
      %s41 = scalar_select %p38, %s39, %s40
      %p44 = pneg %p38
      %p45 = scmp.eq.s32.totalorder %s15, 1
      %p46 = por %p44, %p45
      %p47 = scmp.ne.s32.totalorder %s39, %s42
      %p48 = scmp.eq.s32.totalorder %s15, 0
      %p49 = por %p47, %p48
      %p50 = scmp.ne.s32.totalorder %s39, %s42
      %p51 = scmp.eq.s32.totalorder %s20, 1
      %p52 = por %p50, %p51
      %p53 = scmp.ne.s32.totalorder %s42, %s43
      %p54 = scmp.eq.s32.totalorder %s20, 0
      %p55 = por %p53, %p54
      %p56 = scmp.ne.s32.totalorder %s42, %s43
      %p57 = scmp.eq.s32.totalorder %s21, 1
      %p58 = por %p56, %p57
      %p60 = scmp.ne.s32.totalorder %s43, %s59
      %p61 = scmp.eq.s32.totalorder %s21, 0
      %p62 = por %p60, %p61
      %s64 = sadd.s32 %s63, 1
      %p67 = scmp.eq.s32.totalorder %s15, 1
      %p68 = scmp.ne.s32.totalorder %s63, %s65
      %p69 = scmp.eq.s32.totalorder %s15, 0
      %p70 = por %p68, %p69
      %p71 = scmp.ne.s32.totalorder %s63, %s65
      %p72 = scmp.eq.s32.totalorder %s20, 1
      %p73 = por %p71, %p72
      %p74 = scmp.ne.s32.totalorder %s65, %s66
      %p75 = scmp.eq.s32.totalorder %s20, 0
      %p76 = por %p74, %p75
      %p77 = scmp.ne.s32.totalorder %s65, %s66
      %p78 = scmp.eq.s32.totalorder %s21, 1
      %p79 = por %p77, %p78
      %p81 = scmp.ne.s32.totalorder %s66, %s80
      %p82 = scmp.eq.s32.totalorder %s21, 0
      %p83 = por %p81, %p82
      %s85 = sadd.s32 %s84, 1
      %p88 = scmp.eq.s32.totalorder %s15, 1
      %p89 = scmp.ne.s32.totalorder %s84, %s86
      %p90 = scmp.eq.s32.totalorder %s15, 0
      %p91 = por %p89, %p90
      %p92 = scmp.ne.s32.totalorder %s84, %s86
      %p93 = scmp.eq.s32.totalorder %s20, 1
      %p94 = por %p92, %p93
      %p95 = scmp.ne.s32.totalorder %s86, %s87
      %p96 = scmp.eq.s32.totalorder %s20, 0
      %p97 = por %p95, %p96
      %p98 = scmp.ne.s32.totalorder %s86, %s87
      %p99 = scmp.eq.s32.totalorder %s21, 1
      %p100 = por %p98, %p99
      %p102 = scmp.ne.s32.totalorder %s87, %s101
      %p103 = scmp.eq.s32.totalorder %s21, 0
      %p104 = por %p102, %p103
      %s105 = ssub.s32 %s22, %s34
      %s106 = ssub.s32 %s23, %s30
      %s107 = sor.u32 %s105, %s106
      %p108 = scmp.eq.s32.totalorder %s107, 0
      %s110 = sadd.s32 %s109, 1
      %s111 = scalar_select %p108, %s109, %s110
      %p114 = pneg %p108
      %p115 = scmp.eq.s32.totalorder %s15, 1
      %p116 = por %p114, %p115
      %p117 = scmp.ne.s32.totalorder %s109, %s112
      %p118 = scmp.eq.s32.totalorder %s15, 0
      %p119 = por %p117, %p118
      %p120 = scmp.ne.s32.totalorder %s109, %s112
      %p121 = scmp.eq.s32.totalorder %s20, 1
      %p122 = por %p120, %p121
      %p123 = scmp.ne.s32.totalorder %s112, %s113
      %p124 = scmp.eq.s32.totalorder %s20, 0
      %p125 = por %p123, %p124
      %p126 = scmp.ne.s32.totalorder %s112, %s113
      %p127 = scmp.eq.s32.totalorder %s21, 1
      %p128 = por %p126, %p127
      %p130 = scmp.ne.s32.totalorder %s113, %s129
      %p131 = scmp.eq.s32.totalorder %s21, 0
      %p132 = por %p130, %p131
      %p133 = scmp.le.s32.totalorder 1, %s15
      %p134 = scmp.lt.s32.totalorder %s15, 3
      %p135 = pnand %p133, %p134
      %p136 = pneg %p135
      // Predicated region
      $region9: #{tpu_custom_call.1} parent=5 // pred_check
        _
      $region10: #{tpu_custom_call.1} parent=5 // pred_check_branch
        %138 = sbr.rel (%p135) target = $region12
      $region11: #{tpu_custom_call.1} parent=5 // pred_region
        %s139 = ssub.s32 %s15, 1
        // Predicated region
        $region13: #{tpu_custom_call.1} parent=11 // pred_check
          %p140 = pneg %p76
        $region14: #{tpu_custom_call.1} parent=11 // pred_check_branch
          %142 = sbr.rel (%p140) target = $region16
        $region15: #{tpu_custom_call.1} parent=11 // pred_region
          _
        $region16: #{tpu_custom_call.1} parent=11 // pred_fallthru
          _
        // Predicated region
        $region17: #{tpu_custom_call.1} parent=11 // pred_check
          %p143 = pneg %p97
        $region18: #{tpu_custom_call.1} parent=11 // pred_check_branch
          %145 = sbr.rel (%p143) target = $region20
        $region19: #{tpu_custom_call.1} parent=11 // pred_region
          _
        $region20: #{tpu_custom_call.1} parent=11 // pred_fallthru
          _
      $region12: #{tpu_custom_call.1} parent=5 // pred_fallthru
        _
      %p146 = scmp.lt.s32.totalorder %s15, 2
      // Predicated region
      $region21: #{tpu_custom_call.1} parent=5 // pred_check
        %p147 = pneg %p146
      $region22: #{tpu_custom_call.1} parent=5 // pred_check_branch
        %149 = sbr.rel (%p147) target = $region24
      $region23: #{tpu_custom_call.1} parent=5 // pred_region
        // Predicated region
        $region25: #{tpu_custom_call.1} parent=23 // pred_check
          %p150 = pneg %p49
        $region26: #{tpu_custom_call.1} parent=23 // pred_check_branch
          %152 = sbr.rel (%p150) target = $region28
        $region27: #{tpu_custom_call.1} parent=23 // pred_region
          %s153 = sand.u32 %s39, 1
          %s154 = scalar_lea.sflag [#allocation3], %s153
          %s155 = sand.u32 %s39, 1
          %s156 = smul.addr %s155, 32
          %s157 = scalar_lea.vmem [#allocation2], %s156
          %s159 = ssub.s32 512, 512
          %160 = vsyncadd %s154, %s159
          %s161 = smul.addr %s22, 8
          %s162 = sadd.s32 %s23, %s161
          %s163 = smul.addr %s162, 64
          %s164 = scalar_lea.hbm %s0, %s163
          %s165 = sshll.u32 %s157, 4
          %s166 = int_to_ptr.vmem [resolvable:$true] %s165
          %171 = dma.hbm_to_vmem [thread:$0]  %s164, 512, %s166, %s154, 64, 64, 4
        $region28: #{tpu_custom_call.1} parent=23 // pred_fallthru
          _
      $region24: #{tpu_custom_call.1} parent=5 // pred_fallthru
        _
      %p172 = scmp.le.s32.totalorder 1, %s15
      %p173 = scmp.lt.s32.totalorder %s15, 3
      %p174 = pnand %p172, %p173
      %p175 = pneg %p174
      // Predicated region
      $region29: #{tpu_custom_call.1} parent=5 // pred_check
        _
      $region30: #{tpu_custom_call.1} parent=5 // pred_check_branch
        %177 = sbr.rel (%p174) target = $region32
      $region31: #{tpu_custom_call.1} parent=5 // pred_region
        %s178 = ssub.s32 %s15, 1
        %s179 = sand.u32 %s42, 1
        %s180 = scalar_lea.sflag [#allocation3], %s179
        %s181 = sand.u32 %s42, 1
        %s182 = smul.addr %s181, 32
        %s183 = scalar_lea.vmem [#allocation2], %s182
        // Predicated region
        $region33: #{tpu_custom_call.1} parent=31 // pred_check
          %p184 = pneg %p55
        $region34: #{tpu_custom_call.1} parent=31 // pred_check_branch
          %186 = sbr.rel (%p184) target = $region36
        $region35: #{tpu_custom_call.1} parent=31 // pred_region
          %187 = dma.done %s180, 512
        $region36: #{tpu_custom_call.1} parent=31 // pred_fallthru
          _
        %s188 = sand.u32 %s42, 1
        %s189 = scalar_lea.sflag [#allocation3], %s188
        %s190 = sand.u32 %s42, 1
        %s191 = smul.addr %s190, 32
        %s192 = scalar_lea.vmem [#allocation2], %s191
        %p193 = pneg %p55
        %p194 = pneg %p52
        %p195 = pneg %p76
        %p196 = pneg %p73
        %p197 = pneg %p97
        %p198 = pneg %p94
        %p199 = pneg %p125
        %p200 = pneg %p122
        %s201 = sand.u32 %s112, 1
        %s202 = scalar_lea.sflag [#allocation4], %s201
        %s203 = sand.u32 %s112, 1
        %s204 = smul.addr %s203, 32
        %s205 = scalar_lea.vmem [#allocation5], %s204
        %v207 = vld [vmem:[%s2] sm:$0xff]
        %v208 = vld [vmem:[%s183] sm:$0x1]
        %v209 = vld [vmem:[%s183 + $0x8] sm:$0x1]
        %v210 = vld [vmem:[%s183 + $0x10] sm:$0x1]
        %v211 = vld [vmem:[%s183 + $0x18] sm:$0x1]
        %s212 = scalar_lea.vmem %s1, 8
        %v213 = vld [vmem:[%s212] sm:$0xf]
        %s214 = scalar_lea.vmem %s1, 12
        %v215 = vld [vmem:[%s214] sm:$0xf]
        %v220 = vunpack.c.l.b16 %v208
        %v221 = vunpack.c.l.b16 %v209
        %v222 = vunpack.c.l.b16 %v210
        %v223 = vunpack.c.l.b16 %v211
        %v224 = vpack.c.b16 %v220, %v220
        %v225 = vpack.c.b16 %v221, %v221
        %v226 = vpack.c.b16 %v222, %v222
        %v227 = vpack.c.b16 %v223, %v223
        %v228 = vunpack.c.l.b16 %v224
        %v229 = vunpack.c.l.b16 %v225
        %v230 = vunpack.c.l.b16 %v226
        %v231 = vunpack.c.l.b16 %v227
        %v232 = vrot.slane %v228, 1
        %vm233 = vcmask 1041409
        %v234 = vsel %vm233, %v229, %v232
        %v235 = vrot.slane %v230, 7
        %vm236 = vcmask 1042434
        %v237 = vsel %vm236, %v235, %v234
        %v238 = vrot.slane %v231, 6
        %vm239 = vcmask 1043459
        %v240 = vsel %vm239, %v238, %v237
        %v241 = vpack.c.b16 %v240, %v240
        %vm242 = vcmask 31744
        %v244 = vsel %vm242, %v215, 0
        %vm246 = vcmask 1041408
        %v248 = vsel %vm246, %v241, 0
        %250 = vmatprep.subr.bf16.mxu0 0
        %251 = vmatpush1.bf16.msra.mxu0 %v248
        %252 = vmatprep.subr.bf16.mxu0 0
        %253 = vmatpush1.bf16.msra.mxu0 0
        %254 = vmatprep.subr.bf16.mxu0 0
        %255 = vmatpush1.bf16.msra.mxu0 0
        %256 = vmatprep.subr.bf16.mxu0 0
        %257 = vmatpush1.bf16.msra.mxu0 0
        %258 = vmatprep.subr.bf16.mxu0 0
        %259 = vmatpush1.bf16.msra.mxu0 0
        %260 = vmatprep.subr.bf16.mxu0 0
        %261 = vmatpush1.bf16.msra.mxu0 0
        %262 = vmatprep.subr.bf16.mxu0 0
        %263 = vmatpush1.bf16.msra.mxu0 0
        %264 = vmatprep.subr.bf16.mxu0 0
        %265 = vmatpush1.bf16.msra.mxu0 0
        %266 = vmatprep.subr.bf16.mxu0 0
        %267 = vmatpush1.bf16.msra.mxu0 0
        %268 = vmatprep.subr.bf16.mxu0 0
        %269 = vmatpush1.bf16.msra.mxu0 0
        %270 = vmatprep.subr.bf16.mxu0 0
        %271 = vmatpush1.bf16.msra.mxu0 0
        %272 = vmatprep.subr.bf16.mxu0 0
        %273 = vmatpush1.bf16.msra.mxu0 0
        %274 = vmatprep.subr.bf16.mxu0 0
        %275 = vmatpush1.bf16.msra.mxu0 0
        %276 = vmatprep.subr.bf16.mxu0 0
        %277 = vmatpush1.bf16.msra.mxu0 0
        %278 = vmatprep.subr.bf16.mxu0 0
        %279 = vmatpush1.bf16.msra.mxu0 0
        %280 = vmatprep.subr.bf16.mxu0 0
        %281 = vmatpush1.bf16.msra.mxu0 0
        %282 = vmatprep.mubr.bf16.mxu0 0
        %283 = vmatmul.mubr.bf16.gmra.mrb[0].mxu0 %v244
        %v284 = vpop.f32.mrb[0].mxu0
        %v285 = vadd.f32 0.0, %v284
        %v286 = vpop.f32.mrb[0].mxu0
        %v287 = vpop.f32.mrb[0].mxu0
        %v288 = vpop.f32.mrb[0].mxu0
        %289 = vdwg.mxu0
        %v290 = vrot.slane %v229, 7
        %v291 = vsel %vm233, %v290, %v228
        %v292 = vrot.slane %v230, 6
        %v293 = vsel %vm236, %v292, %v291
        %v294 = vrot.slane %v231, 5
        %v295 = vsel %vm239, %v294, %v293
        %v296 = vpack.c.b16 %v295, %v295
        %v298 = vsel %vm242, %v213, 0
        %v301 = vsel %vm246, %v296, 0
        %303 = vmatprep.subr.bf16.mxu0 0
        %304 = vmatpush1.bf16.msra.mxu0 %v301
        %305 = vmatprep.subr.bf16.mxu0 0
        %306 = vmatpush1.bf16.msra.mxu0 0
        %307 = vmatprep.subr.bf16.mxu0 0
        %308 = vmatpush1.bf16.msra.mxu0 0
        %309 = vmatprep.subr.bf16.mxu0 0
        %310 = vmatpush1.bf16.msra.mxu0 0
        %311 = vmatprep.subr.bf16.mxu0 0
        %312 = vmatpush1.bf16.msra.mxu0 0
        %313 = vmatprep.subr.bf16.mxu0 0
        %314 = vmatpush1.bf16.msra.mxu0 0
        %315 = vmatprep.subr.bf16.mxu0 0
        %316 = vmatpush1.bf16.msra.mxu0 0
        %317 = vmatprep.subr.bf16.mxu0 0
        %318 = vmatpush1.bf16.msra.mxu0 0
        %319 = vmatprep.subr.bf16.mxu0 0
        %320 = vmatpush1.bf16.msra.mxu0 0
        %321 = vmatprep.subr.bf16.mxu0 0
        %322 = vmatpush1.bf16.msra.mxu0 0
        %323 = vmatprep.subr.bf16.mxu0 0
        %324 = vmatpush1.bf16.msra.mxu0 0
        %325 = vmatprep.subr.bf16.mxu0 0
        %326 = vmatpush1.bf16.msra.mxu0 0
        %327 = vmatprep.subr.bf16.mxu0 0
        %328 = vmatpush1.bf16.msra.mxu0 0
        %329 = vmatprep.subr.bf16.mxu0 0
        %330 = vmatpush1.bf16.msra.mxu0 0
        %331 = vmatprep.subr.bf16.mxu0 0
        %332 = vmatpush1.bf16.msra.mxu0 0
        %333 = vmatprep.subr.bf16.mxu0 0
        %334 = vmatpush1.bf16.msra.mxu0 0
        %335 = vmatprep.mubr.bf16.mxu0 0
        %336 = vmatmul.mubr.bf16.gmra.mrb[0].mxu0 %v298
        %v337 = vpop.f32.mrb[0].mxu0
        %v338 = vadd.f32 %v285, %v337
        %v339 = vpop.f32.mrb[0].mxu0
        %v340 = vpop.f32.mrb[0].mxu0
        %v341 = vpop.f32.mrb[0].mxu0
        %342 = vdwg.mxu0
        %v343 = vld [vmem:[%s183] sm:$0x2]
        %v344 = vld [vmem:[%s183 + $0x8] sm:$0x2]
        %v345 = vld [vmem:[%s183 + $0x10] sm:$0x2]
        %v346 = vld [vmem:[%s183 + $0x18] sm:$0x2]
        %s347 = scalar_lea.vmem %s1, 16
        %v348 = vld [vmem:[%s347] sm:$0xf]
        %v353 = vunpack.c.l.b16 %v343
        %v354 = vunpack.c.l.b16 %v344
        %v355 = vunpack.c.l.b16 %v345
        %v356 = vunpack.c.l.b16 %v346
        %v357 = vpack.c.b16 %v353, %v353
        %v358 = vpack.c.b16 %v354, %v354
        %v359 = vpack.c.b16 %v355, %v355
        %v360 = vpack.c.b16 %v356, %v356
        %v361 = vunpack.c.l.b16 %v357
        %v362 = vunpack.c.l.b16 %v358
        %v363 = vunpack.c.l.b16 %v359
        %v364 = vunpack.c.l.b16 %v360
        %v365 = vrot.slane %v361, 2
        %v366 = vrot.slane %v362, 1
        %v367 = vsel %vm233, %v366, %v365
        %v368 = vsel %vm236, %v363, %v367
        %v369 = vrot.slane %v364, 7
        %v370 = vsel %vm239, %v369, %v368
        %v371 = vpack.c.b16 %v370, %v370
        %v373 = vsel %vm242, %v348, 0
        %v376 = vsel %vm246, %v371, 0
        %378 = vmatprep.subr.bf16.mxu0 0
        %379 = vmatpush1.bf16.msra.mxu0 %v376
        %380 = vmatprep.subr.bf16.mxu0 0
        %381 = vmatpush1.bf16.msra.mxu0 0
        %382 = vmatprep.subr.bf16.mxu0 0
        %383 = vmatpush1.bf16.msra.mxu0 0
        %384 = vmatprep.subr.bf16.mxu0 0
        %385 = vmatpush1.bf16.msra.mxu0 0
        %386 = vmatprep.subr.bf16.mxu0 0
        %387 = vmatpush1.bf16.msra.mxu0 0
        %388 = vmatprep.subr.bf16.mxu0 0
        %389 = vmatpush1.bf16.msra.mxu0 0
        %390 = vmatprep.subr.bf16.mxu0 0
        %391 = vmatpush1.bf16.msra.mxu0 0
        %392 = vmatprep.subr.bf16.mxu0 0
        %393 = vmatpush1.bf16.msra.mxu0 0
        %394 = vmatprep.subr.bf16.mxu0 0
        %395 = vmatpush1.bf16.msra.mxu0 0
        %396 = vmatprep.subr.bf16.mxu0 0
        %397 = vmatpush1.bf16.msra.mxu0 0
        %398 = vmatprep.subr.bf16.mxu0 0
        %399 = vmatpush1.bf16.msra.mxu0 0
        %400 = vmatprep.subr.bf16.mxu0 0
        %401 = vmatpush1.bf16.msra.mxu0 0
        %402 = vmatprep.subr.bf16.mxu0 0
        %403 = vmatpush1.bf16.msra.mxu0 0
        %404 = vmatprep.subr.bf16.mxu0 0
        %405 = vmatpush1.bf16.msra.mxu0 0
        %406 = vmatprep.subr.bf16.mxu0 0
        %407 = vmatpush1.bf16.msra.mxu0 0
        %408 = vmatprep.subr.bf16.mxu0 0
        %409 = vmatpush1.bf16.msra.mxu0 0
        %410 = vmatprep.mubr.bf16.mxu0 0
        %411 = vmatmul.mubr.bf16.gmra.mrb[0].mxu0 %v373
        %v412 = vpop.f32.mrb[0].mxu0
        %v413 = vadd.f32 0.0, %v412
        %v414 = vpop.f32.mrb[0].mxu0
        %v415 = vpop.f32.mrb[0].mxu0
        %v416 = vpop.f32.mrb[0].mxu0
        %417 = vdwg.mxu0
        %v418 = vadd.f32 %v338, %v413
        %420 = vset.pattern.permute.xlu0 0
        %421 = vperm.xlu0 %420, %v207
        %v422 = vpop.permute.xlu0 %421
        %v424 = vadd.f32 %v418, %v422
        %v425 = vmax.f32 %v424, 0.0
        %v427 = vcombine.high %v425, %v425
        %v429 = vunpack.c.l.s4 1966171168
        %v430 = vunpack.c.0.s8 %v429
        %v431 = vlaneseq
        %v432 = vshrl.u32 %v431, 7
        %v433 = vsub.s32 %v430, %v432
        %v434 = vrot.slane %v425, %v433
        %v436 = vunpack.c.l.s4 1966171168
        %v437 = vunpack.c.0.s8 %v436
        %v438 = vlaneseq
        %v439 = vshrl.u32 %v438, 7
        %v440 = vsub.s32 %v437, %v439
        %v441 = vrot.slane %v427, %v440
        %v442 = vcombine.high %v434, %v434
        %v443 = vcombine.high %v441, %v441
        %v445 = vunpack.c.l.s4 1966171168
        %v446 = vunpack.c.0.s8 %v445
        %v447 = vlaneseq
        %v448 = vshrl.u32 %v447, 7
        %v449 = vsub.s32 %v446, %v448
        %v450 = vrot.slane %v434, %v449
        %v452 = vunpack.c.l.s4 1966171168
        %v453 = vunpack.c.0.s8 %v452
        %v454 = vlaneseq
        %v455 = vshrl.u32 %v454, 7
        %v456 = vsub.s32 %v453, %v455
        %v457 = vrot.slane %v441, %v456
        %v459 = vunpack.c.l.s4 1966171168
        %v460 = vunpack.c.0.s8 %v459
        %v461 = vlaneseq
        %v462 = vshrl.u32 %v461, 7
        %v463 = vsub.s32 %v460, %v462
        %v464 = vrot.slane %v442, %v463
        %v466 = vunpack.c.l.s4 1966171168
        %v467 = vunpack.c.0.s8 %v466
        %v468 = vlaneseq
        %v469 = vshrl.u32 %v468, 7
        %v470 = vsub.s32 %v467, %v469
        %v471 = vrot.slane %v443, %v470
        %v472 = vcombine.high %v450, %v450
        %v473 = vcombine.high %v457, %v457
        %v474 = vcombine.high %v464, %v464
        %v475 = vcombine.high %v471, %v471
        %vm484 = vcmask 516096
        %485 = vst.msk [vmem:[%s205] sm:$0x1] %vm484, %v450
        %486 = vst.msk [vmem:[%s205 + $0x4] sm:$0x1] %vm484, %v464
        %487 = vst.msk [vmem:[%s205 + $0x8] sm:$0x1] %vm484, %v472
        %488 = vst.msk [vmem:[%s205 + $0xc] sm:$0x1] %vm484, %v474
        %489 = vst.msk [vmem:[%s205 + $0x10] sm:$0x1] %vm484, %v457
        %490 = vst.msk [vmem:[%s205 + $0x14] sm:$0x1] %vm484, %v471
        %491 = vst.msk [vmem:[%s205 + $0x18] sm:$0x1] %vm484, %v473
        %492 = vst.msk [vmem:[%s205 + $0x1c] sm:$0x1] %vm484, %v475
        %v493 = vld [vmem:[%s183] sm:$0x2]
        %v494 = vld [vmem:[%s183 + $0x8] sm:$0x2]
        %v495 = vld [vmem:[%s183 + $0x10] sm:$0x2]
        %v496 = vld [vmem:[%s183 + $0x18] sm:$0x2]
        %v497 = vld [vmem:[%s1] sm:$0xf]
        %s498 = scalar_lea.vmem %s1, 4
        %v499 = vld [vmem:[%s498] sm:$0xf]
        %v504 = vunpack.c.l.b16 %v493
        %v505 = vunpack.c.l.b16 %v494
        %v506 = vunpack.c.l.b16 %v495
        %v507 = vunpack.c.l.b16 %v496
        %v508 = vpack.c.b16 %v504, %v504
        %v509 = vpack.c.b16 %v505, %v505
        %v510 = vpack.c.b16 %v506, %v506
        %v511 = vpack.c.b16 %v507, %v507
        %v512 = vunpack.c.l.b16 %v508
        %v513 = vunpack.c.l.b16 %v509
        %v514 = vunpack.c.l.b16 %v510
        %v515 = vunpack.c.l.b16 %v511
        %v516 = vrot.slane %v512, 3
        %v517 = vrot.slane %v513, 2
        %v518 = vsel %vm233, %v517, %v516
        %v519 = vrot.slane %v514, 1
        %v520 = vsel %vm236, %v519, %v518
        %v521 = vsel %vm239, %v515, %v520
        %v522 = vpack.c.b16 %v521, %v521
        %v524 = vsel %vm242, %v499, 0
        %v527 = vsel %vm246, %v522, 0
        %529 = vmatprep.subr.bf16.mxu0 0
        %530 = vmatpush1.bf16.msra.mxu0 %v527
        %531 = vmatprep.subr.bf16.mxu0 0
        %532 = vmatpush1.bf16.msra.mxu0 0
        %533 = vmatprep.subr.bf16.mxu0 0
        %534 = vmatpush1.bf16.msra.mxu0 0
        %535 = vmatprep.subr.bf16.mxu0 0
        %536 = vmatpush1.bf16.msra.mxu0 0
        %537 = vmatprep.subr.bf16.mxu0 0
        %538 = vmatpush1.bf16.msra.mxu0 0
        %539 = vmatprep.subr.bf16.mxu0 0
        %540 = vmatpush1.bf16.msra.mxu0 0
        %541 = vmatprep.subr.bf16.mxu0 0
        %542 = vmatpush1.bf16.msra.mxu0 0
        %543 = vmatprep.subr.bf16.mxu0 0
        %544 = vmatpush1.bf16.msra.mxu0 0
        %545 = vmatprep.subr.bf16.mxu0 0
        %546 = vmatpush1.bf16.msra.mxu0 0
        %547 = vmatprep.subr.bf16.mxu0 0
        %548 = vmatpush1.bf16.msra.mxu0 0
        %549 = vmatprep.subr.bf16.mxu0 0
        %550 = vmatpush1.bf16.msra.mxu0 0
        %551 = vmatprep.subr.bf16.mxu0 0
        %552 = vmatpush1.bf16.msra.mxu0 0
        %553 = vmatprep.subr.bf16.mxu0 0
        %554 = vmatpush1.bf16.msra.mxu0 0
        %555 = vmatprep.subr.bf16.mxu0 0
        %556 = vmatpush1.bf16.msra.mxu0 0
        %557 = vmatprep.subr.bf16.mxu0 0
        %558 = vmatpush1.bf16.msra.mxu0 0
        %559 = vmatprep.subr.bf16.mxu0 0
        %560 = vmatpush1.bf16.msra.mxu0 0
        %561 = vmatprep.mubr.bf16.mxu0 0
        %562 = vmatmul.mubr.bf16.gmra.mrb[0].mxu0 %v524
        %v563 = vpop.f32.mrb[0].mxu0
        %v564 = vadd.f32 0.0, %v563
        %v565 = vpop.f32.mrb[0].mxu0
        %v566 = vpop.f32.mrb[0].mxu0
        %v567 = vpop.f32.mrb[0].mxu0
        %568 = vdwg.mxu0
        %v569 = vrot.slane %v512, 2
        %v570 = vrot.slane %v513, 1
        %v571 = vsel %vm233, %v570, %v569
        %v572 = vsel %vm236, %v514, %v571
        %v573 = vrot.slane %v515, 7
        %v574 = vsel %vm239, %v573, %v572
        %v575 = vpack.c.b16 %v574, %v574
        %v577 = vsel %vm242, %v497, 0
        %v580 = vsel %vm246, %v575, 0
        %582 = vmatprep.subr.bf16.mxu0 0
        %583 = vmatpush1.bf16.msra.mxu0 %v580
        %584 = vmatprep.subr.bf16.mxu0 0
        %585 = vmatpush1.bf16.msra.mxu0 0
        %586 = vmatprep.subr.bf16.mxu0 0
        %587 = vmatpush1.bf16.msra.mxu0 0
        %588 = vmatprep.subr.bf16.mxu0 0
        %589 = vmatpush1.bf16.msra.mxu0 0
        %590 = vmatprep.subr.bf16.mxu0 0
        %591 = vmatpush1.bf16.msra.mxu0 0
        %592 = vmatprep.subr.bf16.mxu0 0
        %593 = vmatpush1.bf16.msra.mxu0 0
        %594 = vmatprep.subr.bf16.mxu0 0
        %595 = vmatpush1.bf16.msra.mxu0 0
        %596 = vmatprep.subr.bf16.mxu0 0
        %597 = vmatpush1.bf16.msra.mxu0 0
        %598 = vmatprep.subr.bf16.mxu0 0
        %599 = vmatpush1.bf16.msra.mxu0 0
        %600 = vmatprep.subr.bf16.mxu0 0
        %601 = vmatpush1.bf16.msra.mxu0 0
        %602 = vmatprep.subr.bf16.mxu0 0
        %603 = vmatpush1.bf16.msra.mxu0 0
        %604 = vmatprep.subr.bf16.mxu0 0
        %605 = vmatpush1.bf16.msra.mxu0 0
        %606 = vmatprep.subr.bf16.mxu0 0
        %607 = vmatpush1.bf16.msra.mxu0 0
        %608 = vmatprep.subr.bf16.mxu0 0
        %609 = vmatpush1.bf16.msra.mxu0 0
        %610 = vmatprep.subr.bf16.mxu0 0
        %611 = vmatpush1.bf16.msra.mxu0 0
        %612 = vmatprep.subr.bf16.mxu0 0
        %613 = vmatpush1.bf16.msra.mxu0 0
        %614 = vmatprep.mubr.bf16.mxu0 0
        %615 = vmatmul.mubr.bf16.gmra.mrb[0].mxu0 %v577
        %v616 = vpop.f32.mrb[0].mxu0
        %v617 = vadd.f32 %v564, %v616
        %v618 = vpop.f32.mrb[0].mxu0
        %v619 = vpop.f32.mrb[0].mxu0
        %v620 = vpop.f32.mrb[0].mxu0
        %621 = vdwg.mxu0
        %v622 = vld [vmem:[%s183] sm:$0x4]
        %v623 = vld [vmem:[%s183 + $0x8] sm:$0x4]
        %v624 = vld [vmem:[%s183 + $0x10] sm:$0x4]
        %v625 = vld [vmem:[%s183 + $0x18] sm:$0x4]
        %v626 = vld [vmem:[%s212] sm:$0xf]
        %v631 = vunpack.c.l.b16 %v622
        %v632 = vunpack.c.l.b16 %v623
        %v633 = vunpack.c.l.b16 %v624
        %v634 = vunpack.c.l.b16 %v625
        %v635 = vpack.c.b16 %v631, %v631
        %v636 = vpack.c.b16 %v632, %v632
        %v637 = vpack.c.b16 %v633, %v633
        %v638 = vpack.c.b16 %v634, %v634
        %v639 = vunpack.c.l.b16 %v635
        %v640 = vunpack.c.l.b16 %v636
        %v641 = vunpack.c.l.b16 %v637
        %v642 = vunpack.c.l.b16 %v638
        %v643 = vrot.slane %v639, 4
        %v644 = vrot.slane %v640, 3
        %v645 = vsel %vm233, %v644, %v643
        %v646 = vrot.slane %v641, 2
        %v647 = vsel %vm236, %v646, %v645
        %v648 = vrot.slane %v642, 1
        %v649 = vsel %vm239, %v648, %v647
        %v650 = vpack.c.b16 %v649, %v649
        %v652 = vsel %vm242, %v626, 0
        %v655 = vsel %vm246, %v650, 0
        %657 = vmatprep.subr.bf16.mxu0 0
        %658 = vmatpush1.bf16.msra.mxu0 %v655
        %659 = vmatprep.subr.bf16.mxu0 0
        %660 = vmatpush1.bf16.msra.mxu0 0
        %661 = vmatprep.subr.bf16.mxu0 0
        %662 = vmatpush1.bf16.msra.mxu0 0
        %663 = vmatprep.subr.bf16.mxu0 0
        %664 = vmatpush1.bf16.msra.mxu0 0
        %665 = vmatprep.subr.bf16.mxu0 0
        %666 = vmatpush1.bf16.msra.mxu0 0
        %667 = vmatprep.subr.bf16.mxu0 0
        %668 = vmatpush1.bf16.msra.mxu0 0
        %669 = vmatprep.subr.bf16.mxu0 0
        %670 = vmatpush1.bf16.msra.mxu0 0
        %671 = vmatprep.subr.bf16.mxu0 0
        %672 = vmatpush1.bf16.msra.mxu0 0
        %673 = vmatprep.subr.bf16.mxu0 0
        %674 = vmatpush1.bf16.msra.mxu0 0
        %675 = vmatprep.subr.bf16.mxu0 0
        %676 = vmatpush1.bf16.msra.mxu0 0
        %677 = vmatprep.subr.bf16.mxu0 0
        %678 = vmatpush1.bf16.msra.mxu0 0
        %679 = vmatprep.subr.bf16.mxu0 0
        %680 = vmatpush1.bf16.msra.mxu0 0
        %681 = vmatprep.subr.bf16.mxu0 0
        %682 = vmatpush1.bf16.msra.mxu0 0
        %683 = vmatprep.subr.bf16.mxu0 0
        %684 = vmatpush1.bf16.msra.mxu0 0
        %685 = vmatprep.subr.bf16.mxu0 0
        %686 = vmatpush1.bf16.msra.mxu0 0
        %687 = vmatprep.subr.bf16.mxu0 0
        %688 = vmatpush1.bf16.msra.mxu0 0
        %689 = vmatprep.mubr.bf16.mxu0 0
        %690 = vmatmul.mubr.bf16.gmra.mrb[0].mxu0 %v652
        %v691 = vpop.f32.mrb[0].mxu0
        %v692 = vadd.f32 0.0, %v691
        %v693 = vpop.f32.mrb[0].mxu0
        %v694 = vpop.f32.mrb[0].mxu0
        %v695 = vpop.f32.mrb[0].mxu0
        %696 = vdwg.mxu0
        %v697 = vadd.f32 %v617, %v692
        %v698 = vld [vmem:[%s214] sm:$0xf]
        %v699 = vrot.slane %v639, 5
        %v700 = vrot.slane %v640, 4
        %v701 = vsel %vm233, %v700, %v699
        %v702 = vrot.slane %v641, 3
        %v703 = vsel %vm236, %v702, %v701
        %v704 = vrot.slane %v642, 2
        %v705 = vsel %vm239, %v704, %v703
        %v706 = vpack.c.b16 %v705, %v705
        %v708 = vsel %vm242, %v698, 0
        %v711 = vsel %vm246, %v706, 0
        %713 = vmatprep.subr.bf16.mxu0 0
        %714 = vmatpush1.bf16.msra.mxu0 %v711
        %715 = vmatprep.subr.bf16.mxu0 0
        %716 = vmatpush1.bf16.msra.mxu0 0
        %717 = vmatprep.subr.bf16.mxu0 0
        %718 = vmatpush1.bf16.msra.mxu0 0
        %719 = vmatprep.subr.bf16.mxu0 0
        %720 = vmatpush1.bf16.msra.mxu0 0
        %721 = vmatprep.subr.bf16.mxu0 0
        %722 = vmatpush1.bf16.msra.mxu0 0
        %723 = vmatprep.subr.bf16.mxu0 0
        %724 = vmatpush1.bf16.msra.mxu0 0
        %725 = vmatprep.subr.bf16.mxu0 0
        %726 = vmatpush1.bf16.msra.mxu0 0
        %727 = vmatprep.subr.bf16.mxu0 0
        %728 = vmatpush1.bf16.msra.mxu0 0
        %729 = vmatprep.subr.bf16.mxu0 0
        %730 = vmatpush1.bf16.msra.mxu0 0
        %731 = vmatprep.subr.bf16.mxu0 0
        %732 = vmatpush1.bf16.msra.mxu0 0
        %733 = vmatprep.subr.bf16.mxu0 0
        %734 = vmatpush1.bf16.msra.mxu0 0
        %735 = vmatprep.subr.bf16.mxu0 0
        %736 = vmatpush1.bf16.msra.mxu0 0
        %737 = vmatprep.subr.bf16.mxu0 0
        %738 = vmatpush1.bf16.msra.mxu0 0
        %739 = vmatprep.subr.bf16.mxu0 0
        %740 = vmatpush1.bf16.msra.mxu0 0
        %741 = vmatprep.subr.bf16.mxu0 0
        %742 = vmatpush1.bf16.msra.mxu0 0
        %743 = vmatprep.subr.bf16.mxu0 0
        %744 = vmatpush1.bf16.msra.mxu0 0
        %745 = vmatprep.mubr.bf16.mxu0 0
        %746 = vmatmul.mubr.bf16.gmra.mrb[0].mxu0 %v708
        %v747 = vpop.f32.mrb[0].mxu0
        %v748 = vadd.f32 0.0, %v747
        %v749 = vpop.f32.mrb[0].mxu0
        %v750 = vpop.f32.mrb[0].mxu0
        %v751 = vpop.f32.mrb[0].mxu0
        %752 = vdwg.mxu0
        %v753 = vadd.f32 %v697, %v748
        %v754 = vld [vmem:[%s183] sm:$0x8]
        %v755 = vld [vmem:[%s183 + $0x8] sm:$0x8]
        %v756 = vld [vmem:[%s183 + $0x10] sm:$0x8]
        %v757 = vld [vmem:[%s183 + $0x18] sm:$0x8]
        %v758 = vld [vmem:[%s347] sm:$0xf]
        %v763 = vunpack.c.l.b16 %v754
        %v764 = vunpack.c.l.b16 %v755
        %v765 = vunpack.c.l.b16 %v756
        %v766 = vunpack.c.l.b16 %v757
        %v767 = vpack.c.b16 %v763, %v763
        %v768 = vpack.c.b16 %v764, %v764
        %v769 = vpack.c.b16 %v765, %v765
        %v770 = vpack.c.b16 %v766, %v766
        %v771 = vunpack.c.l.b16 %v767
        %v772 = vunpack.c.l.b16 %v768
        %v773 = vunpack.c.l.b16 %v769
        %v774 = vunpack.c.l.b16 %v770
        %v775 = vrot.slane %v771, 6
        %v776 = vrot.slane %v772, 5
        %v777 = vsel %vm233, %v776, %v775
        %v778 = vrot.slane %v773, 4
        %v779 = vsel %vm236, %v778, %v777
        %v780 = vrot.slane %v774, 3
        %v781 = vsel %vm239, %v780, %v779
        %v782 = vpack.c.b16 %v781, %v781
        %v784 = vsel %vm242, %v758, 0
        %v787 = vsel %vm246, %v782, 0
        %789 = vmatprep.subr.bf16.mxu0 0
        %790 = vmatpush1.bf16.msra.mxu0 %v787
        %791 = vmatprep.subr.bf16.mxu0 0
        %792 = vmatpush1.bf16.msra.mxu0 0
        %793 = vmatprep.subr.bf16.mxu0 0
        %794 = vmatpush1.bf16.msra.mxu0 0
        %795 = vmatprep.subr.bf16.mxu0 0
        %796 = vmatpush1.bf16.msra.mxu0 0
        %797 = vmatprep.subr.bf16.mxu0 0
        %798 = vmatpush1.bf16.msra.mxu0 0
        %799 = vmatprep.subr.bf16.mxu0 0
        %800 = vmatpush1.bf16.msra.mxu0 0
        %801 = vmatprep.subr.bf16.mxu0 0
        %802 = vmatpush1.bf16.msra.mxu0 0
        %803 = vmatprep.subr.bf16.mxu0 0
        %804 = vmatpush1.bf16.msra.mxu0 0
        %805 = vmatprep.subr.bf16.mxu0 0
        %806 = vmatpush1.bf16.msra.mxu0 0
        %807 = vmatprep.subr.bf16.mxu0 0
        %808 = vmatpush1.bf16.msra.mxu0 0
        %809 = vmatprep.subr.bf16.mxu0 0
        %810 = vmatpush1.bf16.msra.mxu0 0
        %811 = vmatprep.subr.bf16.mxu0 0
        %812 = vmatpush1.bf16.msra.mxu0 0
        %813 = vmatprep.subr.bf16.mxu0 0
        %814 = vmatpush1.bf16.msra.mxu0 0
        %815 = vmatprep.subr.bf16.mxu0 0
        %816 = vmatpush1.bf16.msra.mxu0 0
        %817 = vmatprep.subr.bf16.mxu0 0
        %818 = vmatpush1.bf16.msra.mxu0 0
        %819 = vmatprep.subr.bf16.mxu0 0
        %820 = vmatpush1.bf16.msra.mxu0 0
        %821 = vmatprep.mubr.bf16.mxu0 0
        %822 = vmatmul.mubr.bf16.gmra.mrb[0].mxu0 %v784
        %v823 = vpop.f32.mrb[0].mxu0
        %v824 = vadd.f32 0.0, %v823
        %v825 = vpop.f32.mrb[0].mxu0
        %v826 = vpop.f32.mrb[0].mxu0
        %v827 = vpop.f32.mrb[0].mxu0
        %828 = vdwg.mxu0
        %v829 = vadd.f32 %v753, %v824
        %v830 = vadd.f32 %v829, %v422
        %v831 = vmax.f32 %v830, 0.0
        %v833 = vcombine.high %v831, %v831
        %v835 = vunpack.c.l.s4 1966171168
        %v836 = vunpack.c.0.s8 %v835
        %v837 = vlaneseq
        %v838 = vshrl.u32 %v837, 7
        %v839 = vsub.s32 %v836, %v838
        %v840 = vrot.slane %v831, %v839
        %v842 = vunpack.c.l.s4 1966171168
        %v843 = vunpack.c.0.s8 %v842
        %v844 = vlaneseq
        %v845 = vshrl.u32 %v844, 7
        %v846 = vsub.s32 %v843, %v845
        %v847 = vrot.slane %v833, %v846
        %v848 = vcombine.high %v840, %v840
        %v849 = vcombine.high %v847, %v847
        %v851 = vunpack.c.l.s4 1966171168
        %v852 = vunpack.c.0.s8 %v851
        %v853 = vlaneseq
        %v854 = vshrl.u32 %v853, 7
        %v855 = vsub.s32 %v852, %v854
        %v856 = vrot.slane %v840, %v855
        %v858 = vunpack.c.l.s4 1966171168
        %v859 = vunpack.c.0.s8 %v858
        %v860 = vlaneseq
        %v861 = vshrl.u32 %v860, 7
        %v862 = vsub.s32 %v859, %v861
        %v863 = vrot.slane %v847, %v862
        %v865 = vunpack.c.l.s4 1966171168
        %v866 = vunpack.c.0.s8 %v865
        %v867 = vlaneseq
        %v868 = vshrl.u32 %v867, 7
        %v869 = vsub.s32 %v866, %v868
        %v870 = vrot.slane %v848, %v869
        %v872 = vunpack.c.l.s4 1966171168
        %v873 = vunpack.c.0.s8 %v872
        %v874 = vlaneseq
        %v875 = vshrl.u32 %v874, 7
        %v876 = vsub.s32 %v873, %v875
        %v877 = vrot.slane %v849, %v876
        %v878 = vcombine.high %v856, %v856
        %v879 = vcombine.high %v863, %v863
        %v880 = vcombine.high %v870, %v870
        %v881 = vcombine.high %v877, %v877
        %890 = vst.msk [vmem:[%s205 + $0x1] sm:$0x1] %vm484, %v856
        %891 = vst.msk [vmem:[%s205 + $0x5] sm:$0x1] %vm484, %v870
        %892 = vst.msk [vmem:[%s205 + $0x9] sm:$0x1] %vm484, %v878
        %893 = vst.msk [vmem:[%s205 + $0xd] sm:$0x1] %vm484, %v880
        %894 = vst.msk [vmem:[%s205 + $0x11] sm:$0x1] %vm484, %v863
        %895 = vst.msk [vmem:[%s205 + $0x15] sm:$0x1] %vm484, %v877
        %896 = vst.msk [vmem:[%s205 + $0x19] sm:$0x1] %vm484, %v879
        %897 = vst.msk [vmem:[%s205 + $0x1d] sm:$0x1] %vm484, %v881
        %v898 = vld [vmem:[%s183] sm:$0x8]
        %v899 = vld [vmem:[%s183 + $0x8] sm:$0x8]
        %v900 = vld [vmem:[%s183 + $0x10] sm:$0x8]
        %v901 = vld [vmem:[%s183 + $0x18] sm:$0x8]
        %v902 = vld [vmem:[%s1] sm:$0xf]
        %v903 = vld [vmem:[%s498] sm:$0xf]
        %v908 = vunpack.c.l.b16 %v898
        %v909 = vunpack.c.l.b16 %v899
        %v910 = vunpack.c.l.b16 %v900
        %v911 = vunpack.c.l.b16 %v901
        %v912 = vpack.c.b16 %v908, %v908
        %v913 = vpack.c.b16 %v909, %v909
        %v914 = vpack.c.b16 %v910, %v910
        %v915 = vpack.c.b16 %v911, %v911
        %v916 = vunpack.c.l.b16 %v912
        %v917 = vunpack.c.l.b16 %v913
        %v918 = vunpack.c.l.b16 %v914
        %v919 = vunpack.c.l.b16 %v915
        %v920 = vrot.slane %v916, 7
        %v921 = vrot.slane %v917, 6
        %v922 = vsel %vm233, %v921, %v920
        %v923 = vrot.slane %v918, 5
        %v924 = vsel %vm236, %v923, %v922
        %v925 = vrot.slane %v919, 4
        %v926 = vsel %vm239, %v925, %v924
        %v927 = vpack.c.b16 %v926, %v926
        %v929 = vsel %vm242, %v903, 0
        %v932 = vsel %vm246, %v927, 0
        %934 = vmatprep.subr.bf16.mxu0 0
        %935 = vmatpush1.bf16.msra.mxu0 %v932
        %936 = vmatprep.subr.bf16.mxu0 0
        %937 = vmatpush1.bf16.msra.mxu0 0
        %938 = vmatprep.subr.bf16.mxu0 0
        %939 = vmatpush1.bf16.msra.mxu0 0
        %940 = vmatprep.subr.bf16.mxu0 0
        %941 = vmatpush1.bf16.msra.mxu0 0
        %942 = vmatprep.subr.bf16.mxu0 0
        %943 = vmatpush1.bf16.msra.mxu0 0
        %944 = vmatprep.subr.bf16.mxu0 0
        %945 = vmatpush1.bf16.msra.mxu0 0
        %946 = vmatprep.subr.bf16.mxu0 0
        %947 = vmatpush1.bf16.msra.mxu0 0
        %948 = vmatprep.subr.bf16.mxu0 0
        %949 = vmatpush1.bf16.msra.mxu0 0
        %950 = vmatprep.subr.bf16.mxu0 0
        %951 = vmatpush1.bf16.msra.mxu0 0
        %952 = vmatprep.subr.bf16.mxu0 0
        %953 = vmatpush1.bf16.msra.mxu0 0
        %954 = vmatprep.subr.bf16.mxu0 0
        %955 = vmatpush1.bf16.msra.mxu0 0
        %956 = vmatprep.subr.bf16.mxu0 0
        %957 = vmatpush1.bf16.msra.mxu0 0
        %958 = vmatprep.subr.bf16.mxu0 0
        %959 = vmatpush1.bf16.msra.mxu0 0
        %960 = vmatprep.subr.bf16.mxu0 0
        %961 = vmatpush1.bf16.msra.mxu0 0
        %962 = vmatprep.subr.bf16.mxu0 0
        %963 = vmatpush1.bf16.msra.mxu0 0
        %964 = vmatprep.subr.bf16.mxu0 0
        %965 = vmatpush1.bf16.msra.mxu0 0
        %966 = vmatprep.mubr.bf16.mxu0 0
        %967 = vmatmul.mubr.bf16.gmra.mrb[0].mxu0 %v929
        %v968 = vpop.f32.mrb[0].mxu0
        %v969 = vadd.f32 0.0, %v968
        %v970 = vpop.f32.mrb[0].mxu0
        %v971 = vpop.f32.mrb[0].mxu0
        %v972 = vpop.f32.mrb[0].mxu0
        %973 = vdwg.mxu0
        %v974 = vrot.slane %v916, 6
        %v975 = vrot.slane %v917, 5
        %v976 = vsel %vm233, %v975, %v974
        %v977 = vrot.slane %v918, 4
        %v978 = vsel %vm236, %v977, %v976
        %v979 = vrot.slane %v919, 3
        %v980 = vsel %vm239, %v979, %v978
        %v981 = vpack.c.b16 %v980, %v980
        %v983 = vsel %vm242, %v902, 0
        %v986 = vsel %vm246, %v981, 0
        %988 = vmatprep.subr.bf16.mxu0 0
        %989 = vmatpush1.bf16.msra.mxu0 %v986
        %990 = vmatprep.subr.bf16.mxu0 0
        %991 = vmatpush1.bf16.msra.mxu0 0
        %992 = vmatprep.subr.bf16.mxu0 0
        %993 = vmatpush1.bf16.msra.mxu0 0
        %994 = vmatprep.subr.bf16.mxu0 0
        %995 = vmatpush1.bf16.msra.mxu0 0
        %996 = vmatprep.subr.bf16.mxu0 0
        %997 = vmatpush1.bf16.msra.mxu0 0
        %998 = vmatprep.subr.bf16.mxu0 0
        %999 = vmatpush1.bf16.msra.mxu0 0
        %1000 = vmatprep.subr.bf16.mxu0 0
        %1001 = vmatpush1.bf16.msra.mxu0 0
        %1002 = vmatprep.subr.bf16.mxu0 0
        %1003 = vmatpush1.bf16.msra.mxu0 0
        %1004 = vmatprep.subr.bf16.mxu0 0
        %1005 = vmatpush1.bf16.msra.mxu0 0
        %1006 = vmatprep.subr.bf16.mxu0 0
        %1007 = vmatpush1.bf16.msra.mxu0 0
        %1008 = vmatprep.subr.bf16.mxu0 0
        %1009 = vmatpush1.bf16.msra.mxu0 0
        %1010 = vmatprep.subr.bf16.mxu0 0
        %1011 = vmatpush1.bf16.msra.mxu0 0
        %1012 = vmatprep.subr.bf16.mxu0 0
        %1013 = vmatpush1.bf16.msra.mxu0 0
        %1014 = vmatprep.subr.bf16.mxu0 0
        %1015 = vmatpush1.bf16.msra.mxu0 0
        %1016 = vmatprep.subr.bf16.mxu0 0
        %1017 = vmatpush1.bf16.msra.mxu0 0
        %1018 = vmatprep.subr.bf16.mxu0 0
        %1019 = vmatpush1.bf16.msra.mxu0 0
        %1020 = vmatprep.mubr.bf16.mxu0 0
        %1021 = vmatmul.mubr.bf16.gmra.mrb[0].mxu0 %v983
        %v1022 = vpop.f32.mrb[0].mxu0
        %v1023 = vadd.f32 %v969, %v1022
        %v1024 = vpop.f32.mrb[0].mxu0
        %v1025 = vpop.f32.mrb[0].mxu0
        %v1026 = vpop.f32.mrb[0].mxu0
        %1027 = vdwg.mxu0
        %v1028 = vld [vmem:[%s183 + $0x4] sm:$0x1]
        %v1029 = vld [vmem:[%s183 + $0xc] sm:$0x1]
        %v1030 = vld [vmem:[%s183 + $0x14] sm:$0x1]
        %v1031 = vld [vmem:[%s183 + $0x1c] sm:$0x1]
        %v1032 = vld [vmem:[%s212] sm:$0xf]
        %v1037 = vunpack.c.l.b16 %v1028
        %v1038 = vunpack.c.l.b16 %v1029
        %v1039 = vunpack.c.l.b16 %v1030
        %v1040 = vunpack.c.l.b16 %v1031
        %v1041 = vpack.c.b16 %v1037, %v1037
        %v1042 = vpack.c.b16 %v1038, %v1038
        %v1043 = vpack.c.b16 %v1039, %v1039
        %v1044 = vpack.c.b16 %v1040, %v1040
        %v1045 = vunpack.c.l.b16 %v1041
        %v1046 = vunpack.c.l.b16 %v1042
        %v1047 = vunpack.c.l.b16 %v1043
        %v1048 = vunpack.c.l.b16 %v1044
        %v1049 = vrot.slane %v1046, 7
        %v1050 = vsel %vm233, %v1049, %v1045
        %v1051 = vrot.slane %v1047, 6
        %v1052 = vsel %vm236, %v1051, %v1050
        %v1053 = vrot.slane %v1048, 5
        %v1054 = vsel %vm239, %v1053, %v1052
        %v1055 = vpack.c.b16 %v1054, %v1054
        %v1057 = vsel %vm242, %v1032, 0
        %v1060 = vsel %vm246, %v1055, 0
        %1062 = vmatprep.subr.bf16.mxu0 0
        %1063 = vmatpush1.bf16.msra.mxu0 %v1060
        %1064 = vmatprep.subr.bf16.mxu0 0
        %1065 = vmatpush1.bf16.msra.mxu0 0
        %1066 = vmatprep.subr.bf16.mxu0 0
        %1067 = vmatpush1.bf16.msra.mxu0 0
        %1068 = vmatprep.subr.bf16.mxu0 0
        %1069 = vmatpush1.bf16.msra.mxu0 0
        %1070 = vmatprep.subr.bf16.mxu0 0
        %1071 = vmatpush1.bf16.msra.mxu0 0
        %1072 = vmatprep.subr.bf16.mxu0 0
        %1073 = vmatpush1.bf16.msra.mxu0 0
        %1074 = vmatprep.subr.bf16.mxu0 0
        %1075 = vmatpush1.bf16.msra.mxu0 0
        %1076 = vmatprep.subr.bf16.mxu0 0
        %1077 = vmatpush1.bf16.msra.mxu0 0
        %1078 = vmatprep.subr.bf16.mxu0 0
        %1079 = vmatpush1.bf16.msra.mxu0 0
        %1080 = vmatprep.subr.bf16.mxu0 0
        %1081 = vmatpush1.bf16.msra.mxu0 0
        %1082 = vmatprep.subr.bf16.mxu0 0
        %1083 = vmatpush1.bf16.msra.mxu0 0
        %1084 = vmatprep.subr.bf16.mxu0 0
        %1085 = vmatpush1.bf16.msra.mxu0 0
        %1086 = vmatprep.subr.bf16.mxu0 0
        %1087 = vmatpush1.bf16.msra.mxu0 0
        %1088 = vmatprep.subr.bf16.mxu0 0
        %1089 = vmatpush1.bf16.msra.mxu0 0
        %1090 = vmatprep.subr.bf16.mxu0 0
        %1091 = vmatpush1.bf16.msra.mxu0 0
        %1092 = vmatprep.subr.bf16.mxu0 0
        %1093 = vmatpush1.bf16.msra.mxu0 0
        %1094 = vmatprep.mubr.bf16.mxu0 0
        %1095 = vmatmul.mubr.bf16.gmra.mrb[0].mxu0 %v1057
        %v1096 = vpop.f32.mrb[0].mxu0
        %v1097 = vadd.f32 0.0, %v1096
        %v1098 = vpop.f32.mrb[0].mxu0
        %v1099 = vpop.f32.mrb[0].mxu0
        %v1100 = vpop.f32.mrb[0].mxu0
        %1101 = vdwg.mxu0
        %v1102 = vadd.f32 %v1023, %v1097
        %v1103 = vld [vmem:[%s214] sm:$0xf]
        %v1104 = vrot.slane %v1045, 1
        %v1105 = vsel %vm233, %v1046, %v1104
        %v1106 = vrot.slane %v1047, 7
        %v1107 = vsel %vm236, %v1106, %v1105
        %v1108 = vrot.slane %v1048, 6
        %v1109 = vsel %vm239, %v1108, %v1107
        %v1110 = vpack.c.b16 %v1109, %v1109
        %v1112 = vsel %vm242, %v1103, 0
        %v1115 = vsel %vm246, %v1110, 0
        %1117 = vmatprep.subr.bf16.mxu0 0
        %1118 = vmatpush1.bf16.msra.mxu0 %v1115
        %1119 = vmatprep.subr.bf16.mxu0 0
        %1120 = vmatpush1.bf16.msra.mxu0 0
        %1121 = vmatprep.subr.bf16.mxu0 0
        %1122 = vmatpush1.bf16.msra.mxu0 0
        %1123 = vmatprep.subr.bf16.mxu0 0
        %1124 = vmatpush1.bf16.msra.mxu0 0
        %1125 = vmatprep.subr.bf16.mxu0 0
        %1126 = vmatpush1.bf16.msra.mxu0 0
        %1127 = vmatprep.subr.bf16.mxu0 0
        %1128 = vmatpush1.bf16.msra.mxu0 0
        %1129 = vmatprep.subr.bf16.mxu0 0
        %1130 = vmatpush1.bf16.msra.mxu0 0
        %1131 = vmatprep.subr.bf16.mxu0 0
        %1132 = vmatpush1.bf16.msra.mxu0 0
        %1133 = vmatprep.subr.bf16.mxu0 0
        %1134 = vmatpush1.bf16.msra.mxu0 0
        %1135 = vmatprep.subr.bf16.mxu0 0
        %1136 = vmatpush1.bf16.msra.mxu0 0
        %1137 = vmatprep.subr.bf16.mxu0 0
        %1138 = vmatpush1.bf16.msra.mxu0 0
        %1139 = vmatprep.subr.bf16.mxu0 0
        %1140 = vmatpush1.bf16.msra.mxu0 0
        %1141 = vmatprep.subr.bf16.mxu0 0
        %1142 = vmatpush1.bf16.msra.mxu0 0
        %1143 = vmatprep.subr.bf16.mxu0 0
        %1144 = vmatpush1.bf16.msra.mxu0 0
        %1145 = vmatprep.subr.bf16.mxu0 0
        %1146 = vmatpush1.bf16.msra.mxu0 0
        %1147 = vmatprep.subr.bf16.mxu0 0
        %1148 = vmatpush1.bf16.msra.mxu0 0
        %1149 = vmatprep.mubr.bf16.mxu0 0
        %1150 = vmatmul.mubr.bf16.gmra.mrb[0].mxu0 %v1112
        %v1151 = vpop.f32.mrb[0].mxu0
        %v1152 = vadd.f32 0.0, %v1151
        %v1153 = vpop.f32.mrb[0].mxu0
        %v1154 = vpop.f32.mrb[0].mxu0
        %v1155 = vpop.f32.mrb[0].mxu0
        %1156 = vdwg.mxu0
        %v1157 = vadd.f32 %v1102, %v1152
        %v1158 = vld [vmem:[%s183 + $0x4] sm:$0x2]
        %v1159 = vld [vmem:[%s183 + $0xc] sm:$0x2]
        %v1160 = vld [vmem:[%s183 + $0x14] sm:$0x2]
        %v1161 = vld [vmem:[%s183 + $0x1c] sm:$0x2]
        %v1162 = vld [vmem:[%s347] sm:$0xf]
        %v1167 = vunpack.c.l.b16 %v1158
        %v1168 = vunpack.c.l.b16 %v1159
        %v1169 = vunpack.c.l.b16 %v1160
        %v1170 = vunpack.c.l.b16 %v1161
        %v1171 = vpack.c.b16 %v1167, %v1167
        %v1172 = vpack.c.b16 %v1168, %v1168
        %v1173 = vpack.c.b16 %v1169, %v1169
        %v1174 = vpack.c.b16 %v1170, %v1170
        %v1175 = vunpack.c.l.b16 %v1171
        %v1176 = vunpack.c.l.b16 %v1172
        %v1177 = vunpack.c.l.b16 %v1173
        %v1178 = vunpack.c.l.b16 %v1174
        %v1179 = vrot.slane %v1175, 2
        %v1180 = vrot.slane %v1176, 1
        %v1181 = vsel %vm233, %v1180, %v1179
        %v1182 = vsel %vm236, %v1177, %v1181
        %v1183 = vrot.slane %v1178, 7
        %v1184 = vsel %vm239, %v1183, %v1182
        %v1185 = vpack.c.b16 %v1184, %v1184
        %v1187 = vsel %vm242, %v1162, 0
        %v1190 = vsel %vm246, %v1185, 0
        %1192 = vmatprep.subr.bf16.mxu0 0
        %1193 = vmatpush1.bf16.msra.mxu0 %v1190
        %1194 = vmatprep.subr.bf16.mxu0 0
        %1195 = vmatpush1.bf16.msra.mxu0 0
        %1196 = vmatprep.subr.bf16.mxu0 0
        %1197 = vmatpush1.bf16.msra.mxu0 0
        %1198 = vmatprep.subr.bf16.mxu0 0
        %1199 = vmatpush1.bf16.msra.mxu0 0
        %1200 = vmatprep.subr.bf16.mxu0 0
        %1201 = vmatpush1.bf16.msra.mxu0 0
        %1202 = vmatprep.subr.bf16.mxu0 0
        %1203 = vmatpush1.bf16.msra.mxu0 0
        %1204 = vmatprep.subr.bf16.mxu0 0
        %1205 = vmatpush1.bf16.msra.mxu0 0
        %1206 = vmatprep.subr.bf16.mxu0 0
        %1207 = vmatpush1.bf16.msra.mxu0 0
        %1208 = vmatprep.subr.bf16.mxu0 0
        %1209 = vmatpush1.bf16.msra.mxu0 0
        %1210 = vmatprep.subr.bf16.mxu0 0
        %1211 = vmatpush1.bf16.msra.mxu0 0
        %1212 = vmatprep.subr.bf16.mxu0 0
        %1213 = vmatpush1.bf16.msra.mxu0 0
        %1214 = vmatprep.subr.bf16.mxu0 0
        %1215 = vmatpush1.bf16.msra.mxu0 0
        %1216 = vmatprep.subr.bf16.mxu0 0
        %1217 = vmatpush1.bf16.msra.mxu0 0
        %1218 = vmatprep.subr.bf16.mxu0 0
        %1219 = vmatpush1.bf16.msra.mxu0 0
        %1220 = vmatprep.subr.bf16.mxu0 0
        %1221 = vmatpush1.bf16.msra.mxu0 0
        %1222 = vmatprep.subr.bf16.mxu0 0
        %1223 = vmatpush1.bf16.msra.mxu0 0
        %1224 = vmatprep.mubr.bf16.mxu0 0
        %1225 = vmatmul.mubr.bf16.gmra.mrb[0].mxu0 %v1187
        %v1226 = vpop.f32.mrb[0].mxu0
        %v1227 = vadd.f32 0.0, %v1226
        %v1228 = vpop.f32.mrb[0].mxu0
        %v1229 = vpop.f32.mrb[0].mxu0
        %v1230 = vpop.f32.mrb[0].mxu0
        %1231 = vdwg.mxu0
        %v1232 = vadd.f32 %v1157, %v1227
        %v1233 = vadd.f32 %v1232, %v422
        %v1234 = vmax.f32 %v1233, 0.0
        %v1236 = vcombine.high %v1234, %v1234
        %v1238 = vunpack.c.l.s4 1966171168
        %v1239 = vunpack.c.0.s8 %v1238
        %v1240 = vlaneseq
        %v1241 = vshrl.u32 %v1240, 7
        %v1242 = vsub.s32 %v1239, %v1241
        %v1243 = vrot.slane %v1234, %v1242
        %v1245 = vunpack.c.l.s4 1966171168
        %v1246 = vunpack.c.0.s8 %v1245
        %v1247 = vlaneseq
        %v1248 = vshrl.u32 %v1247, 7
        %v1249 = vsub.s32 %v1246, %v1248
        %v1250 = vrot.slane %v1236, %v1249
        %v1251 = vcombine.high %v1243, %v1243
        %v1252 = vcombine.high %v1250, %v1250
        %v1254 = vunpack.c.l.s4 1966171168
        %v1255 = vunpack.c.0.s8 %v1254
        %v1256 = vlaneseq
        %v1257 = vshrl.u32 %v1256, 7
        %v1258 = vsub.s32 %v1255, %v1257
        %v1259 = vrot.slane %v1243, %v1258
        %v1261 = vunpack.c.l.s4 1966171168
        %v1262 = vunpack.c.0.s8 %v1261
        %v1263 = vlaneseq
        %v1264 = vshrl.u32 %v1263, 7
        %v1265 = vsub.s32 %v1262, %v1264
        %v1266 = vrot.slane %v1250, %v1265
        %v1268 = vunpack.c.l.s4 1966171168
        %v1269 = vunpack.c.0.s8 %v1268
        %v1270 = vlaneseq
        %v1271 = vshrl.u32 %v1270, 7
        %v1272 = vsub.s32 %v1269, %v1271
        %v1273 = vrot.slane %v1251, %v1272
        %v1275 = vunpack.c.l.s4 1966171168
        %v1276 = vunpack.c.0.s8 %v1275
        %v1277 = vlaneseq
        %v1278 = vshrl.u32 %v1277, 7
        %v1279 = vsub.s32 %v1276, %v1278
        %v1280 = vrot.slane %v1252, %v1279
        %v1281 = vcombine.high %v1259, %v1259
        %v1282 = vcombine.high %v1266, %v1266
        %v1283 = vcombine.high %v1273, %v1273
        %v1284 = vcombine.high %v1280, %v1280
        %1293 = vst.msk [vmem:[%s205 + $0x2] sm:$0x1] %vm484, %v1259
        %1294 = vst.msk [vmem:[%s205 + $0x6] sm:$0x1] %vm484, %v1273
        %1295 = vst.msk [vmem:[%s205 + $0xa] sm:$0x1] %vm484, %v1281
        %1296 = vst.msk [vmem:[%s205 + $0xe] sm:$0x1] %vm484, %v1283
        %1297 = vst.msk [vmem:[%s205 + $0x12] sm:$0x1] %vm484, %v1266
        %1298 = vst.msk [vmem:[%s205 + $0x16] sm:$0x1] %vm484, %v1280
        %1299 = vst.msk [vmem:[%s205 + $0x1a] sm:$0x1] %vm484, %v1282
        %1300 = vst.msk [vmem:[%s205 + $0x1e] sm:$0x1] %vm484, %v1284
        %v1301 = vld [vmem:[%s183 + $0x4] sm:$0x2]
        %v1302 = vld [vmem:[%s183 + $0xc] sm:$0x2]
        %v1303 = vld [vmem:[%s183 + $0x14] sm:$0x2]
        %v1304 = vld [vmem:[%s183 + $0x1c] sm:$0x2]
        %v1305 = vld [vmem:[%s1] sm:$0xf]
        %v1306 = vld [vmem:[%s498] sm:$0xf]
        %v1311 = vunpack.c.l.b16 %v1301
        %v1312 = vunpack.c.l.b16 %v1302
        %v1313 = vunpack.c.l.b16 %v1303
        %v1314 = vunpack.c.l.b16 %v1304
        %v1315 = vpack.c.b16 %v1311, %v1311
        %v1316 = vpack.c.b16 %v1312, %v1312
        %v1317 = vpack.c.b16 %v1313, %v1313
        %v1318 = vpack.c.b16 %v1314, %v1314
        %v1319 = vunpack.c.l.b16 %v1315
        %v1320 = vunpack.c.l.b16 %v1316
        %v1321 = vunpack.c.l.b16 %v1317
        %v1322 = vunpack.c.l.b16 %v1318
        %v1323 = vrot.slane %v1319, 3
        %v1324 = vrot.slane %v1320, 2
        %v1325 = vsel %vm233, %v1324, %v1323
        %v1326 = vrot.slane %v1321, 1
        %v1327 = vsel %vm236, %v1326, %v1325
        %v1328 = vsel %vm239, %v1322, %v1327
        %v1329 = vpack.c.b16 %v1328, %v1328
        %v1331 = vsel %vm242, %v1306, 0
        %v1334 = vsel %vm246, %v1329, 0
        %1336 = vmatprep.subr.bf16.mxu0 0
        %1337 = vmatpush1.bf16.msra.mxu0 %v1334
        %1338 = vmatprep.subr.bf16.mxu0 0
        %1339 = vmatpush1.bf16.msra.mxu0 0
        %1340 = vmatprep.subr.bf16.mxu0 0
        %1341 = vmatpush1.bf16.msra.mxu0 0
        %1342 = vmatprep.subr.bf16.mxu0 0
        %1343 = vmatpush1.bf16.msra.mxu0 0
        %1344 = vmatprep.subr.bf16.mxu0 0
        %1345 = vmatpush1.bf16.msra.mxu0 0
        %1346 = vmatprep.subr.bf16.mxu0 0
        %1347 = vmatpush1.bf16.msra.mxu0 0
        %1348 = vmatprep.subr.bf16.mxu0 0
        %1349 = vmatpush1.bf16.msra.mxu0 0
        %1350 = vmatprep.subr.bf16.mxu0 0
        %1351 = vmatpush1.bf16.msra.mxu0 0
        %1352 = vmatprep.subr.bf16.mxu0 0
        %1353 = vmatpush1.bf16.msra.mxu0 0
        %1354 = vmatprep.subr.bf16.mxu0 0
        %1355 = vmatpush1.bf16.msra.mxu0 0
        %1356 = vmatprep.subr.bf16.mxu0 0
        %1357 = vmatpush1.bf16.msra.mxu0 0
        %1358 = vmatprep.subr.bf16.mxu0 0
        %1359 = vmatpush1.bf16.msra.mxu0 0
        %1360 = vmatprep.subr.bf16.mxu0 0
        %1361 = vmatpush1.bf16.msra.mxu0 0
        %1362 = vmatprep.subr.bf16.mxu0 0
        %1363 = vmatpush1.bf16.msra.mxu0 0
        %1364 = vmatprep.subr.bf16.mxu0 0
        %1365 = vmatpush1.bf16.msra.mxu0 0
        %1366 = vmatprep.subr.bf16.mxu0 0
        %1367 = vmatpush1.bf16.msra.mxu0 0
        %1368 = vmatprep.mubr.bf16.mxu0 0
        %1369 = vmatmul.mubr.bf16.gmra.mrb[0].mxu0 %v1331
        %v1370 = vpop.f32.mrb[0].mxu0
        %v1371 = vadd.f32 0.0, %v1370
        %v1372 = vpop.f32.mrb[0].mxu0
        %v1373 = vpop.f32.mrb[0].mxu0
        %v1374 = vpop.f32.mrb[0].mxu0
        %1375 = vdwg.mxu0
        %v1376 = vrot.slane %v1319, 2
        %v1377 = vrot.slane %v1320, 1
        %v1378 = vsel %vm233, %v1377, %v1376
        %v1379 = vsel %vm236, %v1321, %v1378
        %v1380 = vrot.slane %v1322, 7
        %v1381 = vsel %vm239, %v1380, %v1379
        %v1382 = vpack.c.b16 %v1381, %v1381
        %v1384 = vsel %vm242, %v1305, 0
        %v1387 = vsel %vm246, %v1382, 0
        %1389 = vmatprep.subr.bf16.mxu0 0
        %1390 = vmatpush1.bf16.msra.mxu0 %v1387
        %1391 = vmatprep.subr.bf16.mxu0 0
        %1392 = vmatpush1.bf16.msra.mxu0 0
        %1393 = vmatprep.subr.bf16.mxu0 0
        %1394 = vmatpush1.bf16.msra.mxu0 0
        %1395 = vmatprep.subr.bf16.mxu0 0
        %1396 = vmatpush1.bf16.msra.mxu0 0
        %1397 = vmatprep.subr.bf16.mxu0 0
        %1398 = vmatpush1.bf16.msra.mxu0 0
        %1399 = vmatprep.subr.bf16.mxu0 0
        %1400 = vmatpush1.bf16.msra.mxu0 0
        %1401 = vmatprep.subr.bf16.mxu0 0
        %1402 = vmatpush1.bf16.msra.mxu0 0
        %1403 = vmatprep.subr.bf16.mxu0 0
        %1404 = vmatpush1.bf16.msra.mxu0 0
        %1405 = vmatprep.subr.bf16.mxu0 0
        %1406 = vmatpush1.bf16.msra.mxu0 0
        %1407 = vmatprep.subr.bf16.mxu0 0
        %1408 = vmatpush1.bf16.msra.mxu0 0
        %1409 = vmatprep.subr.bf16.mxu0 0
        %1410 = vmatpush1.bf16.msra.mxu0 0
        %1411 = vmatprep.subr.bf16.mxu0 0
        %1412 = vmatpush1.bf16.msra.mxu0 0
        %1413 = vmatprep.subr.bf16.mxu0 0
        %1414 = vmatpush1.bf16.msra.mxu0 0
        %1415 = vmatprep.subr.bf16.mxu0 0
        %1416 = vmatpush1.bf16.msra.mxu0 0
        %1417 = vmatprep.subr.bf16.mxu0 0
        %1418 = vmatpush1.bf16.msra.mxu0 0
        %1419 = vmatprep.subr.bf16.mxu0 0
        %1420 = vmatpush1.bf16.msra.mxu0 0
        %1421 = vmatprep.mubr.bf16.mxu0 0
        %1422 = vmatmul.mubr.bf16.gmra.mrb[0].mxu0 %v1384
        %v1423 = vpop.f32.mrb[0].mxu0
        %v1424 = vadd.f32 %v1371, %v1423
        %v1425 = vpop.f32.mrb[0].mxu0
        %v1426 = vpop.f32.mrb[0].mxu0
        %v1427 = vpop.f32.mrb[0].mxu0
        %1428 = vdwg.mxu0
        %v1429 = vld [vmem:[%s183 + $0x4] sm:$0x4]
        %v1430 = vld [vmem:[%s183 + $0xc] sm:$0x4]
        %v1431 = vld [vmem:[%s183 + $0x14] sm:$0x4]
        %v1432 = vld [vmem:[%s183 + $0x1c] sm:$0x4]
        %v1433 = vld [vmem:[%s212] sm:$0xf]
        %v1438 = vunpack.c.l.b16 %v1429
        %v1439 = vunpack.c.l.b16 %v1430
        %v1440 = vunpack.c.l.b16 %v1431
        %v1441 = vunpack.c.l.b16 %v1432
        %v1442 = vpack.c.b16 %v1438, %v1438
        %v1443 = vpack.c.b16 %v1439, %v1439
        %v1444 = vpack.c.b16 %v1440, %v1440
        %v1445 = vpack.c.b16 %v1441, %v1441
        %v1446 = vunpack.c.l.b16 %v1442
        %v1447 = vunpack.c.l.b16 %v1443
        %v1448 = vunpack.c.l.b16 %v1444
        %v1449 = vunpack.c.l.b16 %v1445
        %v1450 = vrot.slane %v1446, 4
        %v1451 = vrot.slane %v1447, 3
        %v1452 = vsel %vm233, %v1451, %v1450
        %v1453 = vrot.slane %v1448, 2
        %v1454 = vsel %vm236, %v1453, %v1452
        %v1455 = vrot.slane %v1449, 1
        %v1456 = vsel %vm239, %v1455, %v1454
        %v1457 = vpack.c.b16 %v1456, %v1456
        %v1459 = vsel %vm242, %v1433, 0
        %v1462 = vsel %vm246, %v1457, 0
        %1464 = vmatprep.subr.bf16.mxu0 0
        %1465 = vmatpush1.bf16.msra.mxu0 %v1462
        %1466 = vmatprep.subr.bf16.mxu0 0
        %1467 = vmatpush1.bf16.msra.mxu0 0
        %1468 = vmatprep.subr.bf16.mxu0 0
        %1469 = vmatpush1.bf16.msra.mxu0 0
        %1470 = vmatprep.subr.bf16.mxu0 0
        %1471 = vmatpush1.bf16.msra.mxu0 0
        %1472 = vmatprep.subr.bf16.mxu0 0
        %1473 = vmatpush1.bf16.msra.mxu0 0
        %1474 = vmatprep.subr.bf16.mxu0 0
        %1475 = vmatpush1.bf16.msra.mxu0 0
        %1476 = vmatprep.subr.bf16.mxu0 0
        %1477 = vmatpush1.bf16.msra.mxu0 0
        %1478 = vmatprep.subr.bf16.mxu0 0
        %1479 = vmatpush1.bf16.msra.mxu0 0
        %1480 = vmatprep.subr.bf16.mxu0 0
        %1481 = vmatpush1.bf16.msra.mxu0 0
        %1482 = vmatprep.subr.bf16.mxu0 0
        %1483 = vmatpush1.bf16.msra.mxu0 0
        %1484 = vmatprep.subr.bf16.mxu0 0
        %1485 = vmatpush1.bf16.msra.mxu0 0
        %1486 = vmatprep.subr.bf16.mxu0 0
        %1487 = vmatpush1.bf16.msra.mxu0 0
        %1488 = vmatprep.subr.bf16.mxu0 0
        %1489 = vmatpush1.bf16.msra.mxu0 0
        %1490 = vmatprep.subr.bf16.mxu0 0
        %1491 = vmatpush1.bf16.msra.mxu0 0
        %1492 = vmatprep.subr.bf16.mxu0 0
        %1493 = vmatpush1.bf16.msra.mxu0 0
        %1494 = vmatprep.subr.bf16.mxu0 0
        %1495 = vmatpush1.bf16.msra.mxu0 0
        %1496 = vmatprep.mubr.bf16.mxu0 0
        %1497 = vmatmul.mubr.bf16.gmra.mrb[0].mxu0 %v1459
        %v1498 = vpop.f32.mrb[0].mxu0
        %v1499 = vadd.f32 0.0, %v1498
        %v1500 = vpop.f32.mrb[0].mxu0
        %v1501 = vpop.f32.mrb[0].mxu0
        %v1502 = vpop.f32.mrb[0].mxu0
        %1503 = vdwg.mxu0
        %v1504 = vadd.f32 %v1424, %v1499
        %v1505 = vld [vmem:[%s214] sm:$0xf]
        %v1506 = vrot.slane %v1446, 5
        %v1507 = vrot.slane %v1447, 4
        %v1508 = vsel %vm233, %v1507, %v1506
        %v1509 = vrot.slane %v1448, 3
        %v1510 = vsel %vm236, %v1509, %v1508
        %v1511 = vrot.slane %v1449, 2
        %v1512 = vsel %vm239, %v1511, %v1510
        %v1513 = vpack.c.b16 %v1512, %v1512
        %v1515 = vsel %vm242, %v1505, 0
        %v1518 = vsel %vm246, %v1513, 0
        %1520 = vmatprep.subr.bf16.mxu0 0
        %1521 = vmatpush1.bf16.msra.mxu0 %v1518
        %1522 = vmatprep.subr.bf16.mxu0 0
        %1523 = vmatpush1.bf16.msra.mxu0 0
        %1524 = vmatprep.subr.bf16.mxu0 0
        %1525 = vmatpush1.bf16.msra.mxu0 0
        %1526 = vmatprep.subr.bf16.mxu0 0
        %1527 = vmatpush1.bf16.msra.mxu0 0
        %1528 = vmatprep.subr.bf16.mxu0 0
        %1529 = vmatpush1.bf16.msra.mxu0 0
        %1530 = vmatprep.subr.bf16.mxu0 0
        %1531 = vmatpush1.bf16.msra.mxu0 0
        %1532 = vmatprep.subr.bf16.mxu0 0
        %1533 = vmatpush1.bf16.msra.mxu0 0
        %1534 = vmatprep.subr.bf16.mxu0 0
        %1535 = vmatpush1.bf16.msra.mxu0 0
        %1536 = vmatprep.subr.bf16.mxu0 0
        %1537 = vmatpush1.bf16.msra.mxu0 0
        %1538 = vmatprep.subr.bf16.mxu0 0
        %1539 = vmatpush1.bf16.msra.mxu0 0
        %1540 = vmatprep.subr.bf16.mxu0 0
        %1541 = vmatpush1.bf16.msra.mxu0 0
        %1542 = vmatprep.subr.bf16.mxu0 0
        %1543 = vmatpush1.bf16.msra.mxu0 0
        %1544 = vmatprep.subr.bf16.mxu0 0
        %1545 = vmatpush1.bf16.msra.mxu0 0
        %1546 = vmatprep.subr.bf16.mxu0 0
        %1547 = vmatpush1.bf16.msra.mxu0 0
        %1548 = vmatprep.subr.bf16.mxu0 0
        %1549 = vmatpush1.bf16.msra.mxu0 0
        %1550 = vmatprep.subr.bf16.mxu0 0
        %1551 = vmatpush1.bf16.msra.mxu0 0
        %1552 = vmatprep.mubr.bf16.mxu0 0
        %1553 = vmatmul.mubr.bf16.gmra.mrb[0].mxu0 %v1515
        %v1554 = vpop.f32.mrb[0].mxu0
        %v1555 = vadd.f32 0.0, %v1554
        %v1556 = vpop.f32.mrb[0].mxu0
        %v1557 = vpop.f32.mrb[0].mxu0
        %v1558 = vpop.f32.mrb[0].mxu0
        %1559 = vdwg.mxu0
        %v1560 = vadd.f32 %v1504, %v1555
        %v1561 = vld [vmem:[%s183 + $0x4] sm:$0x8]
        %v1562 = vld [vmem:[%s183 + $0xc] sm:$0x8]
        %v1563 = vld [vmem:[%s183 + $0x14] sm:$0x8]
        %v1564 = vld [vmem:[%s183 + $0x1c] sm:$0x8]
        %v1565 = vld [vmem:[%s347] sm:$0xf]
        %v1570 = vunpack.c.l.b16 %v1561
        %v1571 = vunpack.c.l.b16 %v1562
        %v1572 = vunpack.c.l.b16 %v1563
        %v1573 = vunpack.c.l.b16 %v1564
        %v1574 = vpack.c.b16 %v1570, %v1570
        %v1575 = vpack.c.b16 %v1571, %v1571
        %v1576 = vpack.c.b16 %v1572, %v1572
        %v1577 = vpack.c.b16 %v1573, %v1573
        %v1578 = vunpack.c.l.b16 %v1574
        %v1579 = vunpack.c.l.b16 %v1575
        %v1580 = vunpack.c.l.b16 %v1576
        %v1581 = vunpack.c.l.b16 %v1577
        %v1582 = vrot.slane %v1578, 6
        %v1583 = vrot.slane %v1579, 5
        %v1584 = vsel %vm233, %v1583, %v1582
        %v1585 = vrot.slane %v1580, 4
        %v1586 = vsel %vm236, %v1585, %v1584
        %v1587 = vrot.slane %v1581, 3
        %v1588 = vsel %vm239, %v1587, %v1586
        %v1589 = vpack.c.b16 %v1588, %v1588
        %v1591 = vsel %vm242, %v1565, 0
        %v1594 = vsel %vm246, %v1589, 0
        %1596 = vmatprep.subr.bf16.mxu0 0
        %1597 = vmatpush1.bf16.msra.mxu0 %v1594
        %1598 = vmatprep.subr.bf16.mxu0 0
        %1599 = vmatpush1.bf16.msra.mxu0 0
        %1600 = vmatprep.subr.bf16.mxu0 0
        %1601 = vmatpush1.bf16.msra.mxu0 0
        %1602 = vmatprep.subr.bf16.mxu0 0
        %1603 = vmatpush1.bf16.msra.mxu0 0
        %1604 = vmatprep.subr.bf16.mxu0 0
        %1605 = vmatpush1.bf16.msra.mxu0 0
        %1606 = vmatprep.subr.bf16.mxu0 0
        %1607 = vmatpush1.bf16.msra.mxu0 0
        %1608 = vmatprep.subr.bf16.mxu0 0
        %1609 = vmatpush1.bf16.msra.mxu0 0
        %1610 = vmatprep.subr.bf16.mxu0 0
        %1611 = vmatpush1.bf16.msra.mxu0 0
        %1612 = vmatprep.subr.bf16.mxu0 0
        %1613 = vmatpush1.bf16.msra.mxu0 0
        %1614 = vmatprep.subr.bf16.mxu0 0
        %1615 = vmatpush1.bf16.msra.mxu0 0
        %1616 = vmatprep.subr.bf16.mxu0 0
        %1617 = vmatpush1.bf16.msra.mxu0 0
        %1618 = vmatprep.subr.bf16.mxu0 0
        %1619 = vmatpush1.bf16.msra.mxu0 0
        %1620 = vmatprep.subr.bf16.mxu0 0
        %1621 = vmatpush1.bf16.msra.mxu0 0
        %1622 = vmatprep.subr.bf16.mxu0 0
        %1623 = vmatpush1.bf16.msra.mxu0 0
        %1624 = vmatprep.subr.bf16.mxu0 0
        %1625 = vmatpush1.bf16.msra.mxu0 0
        %1626 = vmatprep.subr.bf16.mxu0 0
        %1627 = vmatpush1.bf16.msra.mxu0 0
        %1628 = vmatprep.mubr.bf16.mxu0 0
        %1629 = vmatmul.mubr.bf16.gmra.mrb[0].mxu0 %v1591
        %v1630 = vpop.f32.mrb[0].mxu0
        %v1631 = vadd.f32 0.0, %v1630
        %v1632 = vpop.f32.mrb[0].mxu0
        %v1633 = vpop.f32.mrb[0].mxu0
        %v1634 = vpop.f32.mrb[0].mxu0
        %1635 = vdwg.mxu0
        %v1636 = vadd.f32 %v1560, %v1631
        %v1637 = vadd.f32 %v1636, %v422
        %v1638 = vmax.f32 %v1637, 0.0
        %v1640 = vcombine.high %v1638, %v1638
        %v1642 = vunpack.c.l.s4 1966171168
        %v1643 = vunpack.c.0.s8 %v1642
        %v1644 = vlaneseq
        %v1645 = vshrl.u32 %v1644, 7
        %v1646 = vsub.s32 %v1643, %v1645
        %v1647 = vrot.slane %v1638, %v1646
        %v1649 = vunpack.c.l.s4 1966171168
        %v1650 = vunpack.c.0.s8 %v1649
        %v1651 = vlaneseq
        %v1652 = vshrl.u32 %v1651, 7
        %v1653 = vsub.s32 %v1650, %v1652
        %v1654 = vrot.slane %v1640, %v1653
        %v1655 = vcombine.high %v1647, %v1647
        %v1656 = vcombine.high %v1654, %v1654
        %v1658 = vunpack.c.l.s4 1966171168
        %v1659 = vunpack.c.0.s8 %v1658
        %v1660 = vlaneseq
        %v1661 = vshrl.u32 %v1660, 7
        %v1662 = vsub.s32 %v1659, %v1661
        %v1663 = vrot.slane %v1647, %v1662
        %v1665 = vunpack.c.l.s4 1966171168
        %v1666 = vunpack.c.0.s8 %v1665
        %v1667 = vlaneseq
        %v1668 = vshrl.u32 %v1667, 7
        %v1669 = vsub.s32 %v1666, %v1668
        %v1670 = vrot.slane %v1654, %v1669
        %v1672 = vunpack.c.l.s4 1966171168
        %v1673 = vunpack.c.0.s8 %v1672
        %v1674 = vlaneseq
        %v1675 = vshrl.u32 %v1674, 7
        %v1676 = vsub.s32 %v1673, %v1675
        %v1677 = vrot.slane %v1655, %v1676
        %v1679 = vunpack.c.l.s4 1966171168
        %v1680 = vunpack.c.0.s8 %v1679
        %v1681 = vlaneseq
        %v1682 = vshrl.u32 %v1681, 7
        %v1683 = vsub.s32 %v1680, %v1682
        %v1684 = vrot.slane %v1656, %v1683
        %v1685 = vcombine.high %v1663, %v1663
        %v1686 = vcombine.high %v1670, %v1670
        %v1687 = vcombine.high %v1677, %v1677
        %v1688 = vcombine.high %v1684, %v1684
        %1697 = vst.msk [vmem:[%s205 + $0x3] sm:$0x1] %vm484, %v1663
        %1698 = vst.msk [vmem:[%s205 + $0x7] sm:$0x1] %vm484, %v1677
        %1699 = vst.msk [vmem:[%s205 + $0xb] sm:$0x1] %vm484, %v1685
        %1700 = vst.msk [vmem:[%s205 + $0xf] sm:$0x1] %vm484, %v1687
        %1701 = vst.msk [vmem:[%s205 + $0x13] sm:$0x1] %vm484, %v1670
        %1702 = vst.msk [vmem:[%s205 + $0x17] sm:$0x1] %vm484, %v1684
        %1703 = vst.msk [vmem:[%s205 + $0x1b] sm:$0x1] %vm484, %v1686
        %1704 = vst.msk [vmem:[%s205 + $0x1f] sm:$0x1] %vm484, %v1688
        %s1705 = sand.u32 %s112, 1
        %s1706 = scalar_lea.sflag [#allocation4], %s1705
        %s1707 = sand.u32 %s112, 1
        %s1708 = smul.addr %s1707, 32
        %s1709 = scalar_lea.vmem [#allocation5], %s1708
        // Predicated region
        $region37: #{tpu_custom_call.1} parent=31 // pred_check
          %p1710 = pneg %p122
        $region38: #{tpu_custom_call.1} parent=31 // pred_check_branch
          %1712 = sbr.rel (%p1710) target = $region40
        $region39: #{tpu_custom_call.1} parent=31 // pred_region
          %s1714 = ssub.s32 512, 512
          %1715 = vsyncadd %s1706, %s1714
          %s1716 = smul.addr %s24, 8
          %s1717 = sadd.s32 %s25, %s1716
          %s1718 = smul.addr %s1717, 64
          %s1719 = scalar_lea.hbm %s3, %s1718
          %s1720 = sshll.u32 %s1709, 4
          %s1721 = int_to_ptr.vmem [resolvable:$true] %s1720
          %1726 = dma.vmem_to_hbm [thread:$0]  %s1721, 512, %s1719, %s1706, 64, 64, 4
        $region40: #{tpu_custom_call.1} parent=31 // pred_fallthru
          _
      $region32: #{tpu_custom_call.1} parent=5 // pred_fallthru
        _
      %p1727 = scmp.le.s32.totalorder 2, %s15
      // Predicated region
      $region41: #{tpu_custom_call.1} parent=5 // pred_check
        %p1728 = pneg %p1727
      $region42: #{tpu_custom_call.1} parent=5 // pred_check_branch
        %1730 = sbr.rel (%p1728) target = $region44
      $region43: #{tpu_custom_call.1} parent=5 // pred_region
        %s1731 = ssub.s32 %s15, 2
        // Predicated region
        $region45: #{tpu_custom_call.1} parent=43 // pred_check
          %p1732 = pneg %p128
        $region46: #{tpu_custom_call.1} parent=43 // pred_check_branch
          %1734 = sbr.rel (%p1732) target = $region48
        $region47: #{tpu_custom_call.1} parent=43 // pred_region
          %s1735 = sand.u32 %s113, 1
          %s1736 = scalar_lea.sflag [#allocation4], %s1735
          %s1737 = sand.u32 %s113, 1
          %s1738 = smul.addr %s1737, 32
          %s1739 = scalar_lea.vmem [#allocation5], %s1738
          %1740 = dma.done %s1736, 512
        $region48: #{tpu_custom_call.1} parent=43 // pred_fallthru
          _
      $region44: #{tpu_custom_call.1} parent=5 // pred_fallthru
        _
    $region6: #{tpu_custom_call.1} parent=1 // loop_footer
      %s19 = sadd.s32 1, %s15
    $region7: #{tpu_custom_call.1} parent=1 // loop_footer_branch
      %14 = sbr.rel target = $region3
    $region8: #{tpu_custom_call.1} parent=1 // loop_exit
      _
    %1741 = vsyncpa [#allocation3], 1
    %s1742 = scalar_lea.sflag [#allocation3], 1
    %1743 = vsyncpa %s1742, 1
    %1744 = vsyncpa [#allocation4], 1
    %s1745 = scalar_lea.sflag [#allocation4], 1
    %1746 = vsyncpa %s1745, 1

</llo_original>
